<compile_context>
chip_gen: v5e
topology: v5e:2x2
jax: 0.10.0
libtpu: 0.0.40
codegen_flags: <defaults>
</compile_context>

<pallas_src>
import functools
import math

import jax
import jax.numpy as jnp
from jax.experimental import pallas as pl
from jax.experimental.pallas import tpu as pltpu


# ------------------------------ fused kernel --------------------------------

def _decoder_block_kernel(
    x_ref, val_ref, key_ref, smask_ref, tmask_ref,
    wqkv_s_ref, wo_s_ref, bo_s_ref, ng_ref, nb_ref,
    wq_c_ref, wk_c_ref, wv_c_ref, wo_c_ref, bo_c_ref,
    n1g_ref, n1b_ref, w1_ref, b1_ref, w2_ref, b2_ref, n2g_ref, n2b_ref,
    o_ref, *, heads, embed_size, eps):
    E = embed_size
    Dh = E // heads
    inv_sqrt_e = 1.0 / math.sqrt(E)

    x = x_ref[0]          # (Lq, E)
    value = val_ref[0]    # (Lk, E)
    key = key_ref[0]      # (Lk, E)
    smask = smask_ref[0]  # (Lq, Lk) int32
    tmask = tmask_ref[0]  # (Lq, Lq) int32

    def layernorm(a, g, b):
        mu = jnp.mean(a, axis=-1, keepdims=True)
        var = jnp.mean((a - mu) ** 2, axis=-1, keepdims=True)
        return (a - mu) * jax.lax.rsqrt(var + eps) * g + b

    def mha(q, k, v, mask, wo, bo):
        # q, k, v: (len, E) already per-head projected; head h lives in lanes
        # [h*Dh, (h+1)*Dh).  heads is a small static Python loop.
        outs = []
        for h in range(heads):
            sl = slice(h * Dh, (h + 1) * Dh)
            qh, kh, vh = q[:, sl], k[:, sl], v[:, sl]
            # energy = qh @ kh^T  (contract last dims; avoids explicit transpose)
            e = jax.lax.dot_general(qh, kh, (((1,), (1,)), ((), ())),
                                    preferred_element_type=jnp.float32)
            # masked_fill(-1e20) BEFORE the /sqrt(embed_size) scaling (as in ref).
            e = jnp.where(mask == 0, jnp.float32(-1e20), e) * inv_sqrt_e
            e = e - jnp.max(e, axis=-1, keepdims=True)
            p = jnp.exp(e)
            p = p * pl.reciprocal(jnp.sum(p, axis=-1, keepdims=True), approx=True)
            outs.append(jnp.dot(p, vh, preferred_element_type=jnp.float32))
        o = jnp.concatenate(outs, axis=-1)                       # (Lq, E)
        return jnp.dot(o, wo, preferred_element_type=jnp.float32) + bo

    # --- masked self-attention on x (Q=K=V=x, fused (E,3E) projection) -----
    qkv = jnp.dot(x, wqkv_s_ref[...], preferred_element_type=jnp.float32)
    attn = mha(qkv[:, :E], qkv[:, E:2 * E], qkv[:, 2 * E:], tmask,
               wo_s_ref[...], bo_s_ref[...])
    query = layernorm(attn + x, ng_ref[...], nb_ref[...])
    # TODO(synk): nn.Dropout treated as identity (inference mode).

    # --- cross attention: queries from decoder, keys/values from encoder ---
    qc = jnp.dot(query, wq_c_ref[...], preferred_element_type=jnp.float32)
    kc = jnp.dot(key, wk_c_ref[...], preferred_element_type=jnp.float32)
    vc = jnp.dot(value, wv_c_ref[...], preferred_element_type=jnp.float32)
    attn2 = mha(qc, kc, vc, smask, wo_c_ref[...], bo_c_ref[...])
    xln = layernorm(attn2 + query, n1g_ref[...], n1b_ref[...])

    # --- feed forward (Linear -> ReLU -> Linear) ----------------------------
    h = jnp.maximum(
        jnp.dot(xln, w1_ref[...], preferred_element_type=jnp.float32) + b1_ref[...],
        0.0)
    ff = jnp.dot(h, w2_ref[...], preferred_element_type=jnp.float32) + b2_ref[...]
    out = layernorm(ff + xln, n2g_ref[...], n2b_ref[...])

    o_ref[0] = out.astype(o_ref.dtype)


# ------------------------------ wrapper --------------------------------------

def _prep_mask(m, N, Lq, Lk):
    """Collapse the (broadcast) head dim and return a compact (N, Lq, Lk) int32
    mask (no H-times HBM broadcast, no f32 mask)."""
    if m is None:
        return jnp.ones((N, Lq, Lk), jnp.int32)
    m = jnp.asarray(m)
    if m.ndim == 4:
        # TODO(synk): true per-head masks (head dim > 1) are collapsed to head 0.
        m = m[:, 0]
    return jnp.broadcast_to(m, (N, Lq, Lk)).astype(jnp.int32)


def decoder_block_forward(params, x, value, key_, src_mask, trg_mask, *, heads):
    """DecoderBlock.forward(x, value, key, src_mask, trg_mask) as one pallas_call."""
    N, Lq, E = x.shape
    Lk = key_.shape[1]
    F = params['ff_w1'].shape[1]

    sm = _prep_mask(src_mask, N, Lq, Lk)
    tm = _prep_mask(trg_mask, N, Lq, Lq)

    def full(shape):
        return pl.BlockSpec(shape, lambda n: (0,) * len(shape))

    kernel = functools.partial(_decoder_block_kernel, heads=heads,
                               embed_size=E, eps=1e-5)

    return pl.pallas_call(
        kernel,
        out_shape=jax.ShapeDtypeStruct((N, Lq, E), jnp.float32),
        grid=(N,),
        in_specs=[
            pl.BlockSpec((1, Lq, E), lambda n: (n, 0, 0)),    # x
            pl.BlockSpec((1, Lk, E), lambda n: (n, 0, 0)),    # value (enc)
            pl.BlockSpec((1, Lk, E), lambda n: (n, 0, 0)),    # key   (enc)
            pl.BlockSpec((1, Lq, Lk), lambda n: (n, 0, 0)),   # src mask
            pl.BlockSpec((1, Lq, Lq), lambda n: (n, 0, 0)),   # trg mask
            full((E, 3 * E)),                                 # self qkv (block-diag)
            full((E, E)), full((1, E)),                       # self fc_out w/b
            full((1, E)), full((1, E)),                       # norm g/b
            full((E, E)), full((E, E)), full((E, E)),         # cross wq/wk/wv
            full((E, E)), full((1, E)),                       # cross fc_out w/b
            full((1, E)), full((1, E)),                       # norm1 g/b
            full((E, F)), full((1, F)),                       # ff w1/b1
            full((F, E)), full((1, E)),                       # ff w2/b2
            full((1, E)), full((1, E)),                       # norm2 g/b
        ],
        out_specs=pl.BlockSpec((1, Lq, E), lambda n: (n, 0, 0)),
        compiler_params=pltpu.CompilerParams(dimension_semantics=("parallel",)),
    )(x, value, key_, sm, tm,
      params['self_wqkv'], params['self_wo'], params['self_bo'],
      params['norm_g'], params['norm_b'],
      params['cross_wq'], params['cross_wk'], params['cross_wv'],
      params['cross_wo'], params['cross_bo'],
      params['norm1_g'], params['norm1_b'],
      params['ff_w1'], params['ff_b1'], params['ff_w2'], params['ff_b2'],
      params['norm2_g'], params['norm2_b'])


# --------------------------- parameter init ----------------------------------

def init_decoder_block_params(key, embed_size, heads, forward_expansion):
    E = embed_size
    Dh = E // heads
    F = forward_expansion * E
    assert Dh * heads == E

    def nrm(k, shape, scale=0.02):
        return scale * jax.random.normal(k, shape, jnp.float32)

    def bdiag(w):
        # shared per-head (Dh, Dh) linear (applied as x @ w) -> block-diagonal
        # (E, E) so the per-head projection is one lane-dense matmul in-kernel.
        return jax.scipy.linalg.block_diag(*([w] * heads))

    ks = jax.random.split(key, 10)
    wq_s, wk_s, wv_s = (nrm(ks[i], (Dh, Dh)) for i in range(3))
    wq_c, wk_c, wv_c = (nrm(ks[3 + i], (Dh, Dh)) for i in range(3))

    return {
        # self attention (Q=K=V): fused [q|k|v] block-diagonals -> (E, 3E)
        'self_wqkv': jnp.concatenate([bdiag(wq_s), bdiag(wk_s), bdiag(wv_s)], axis=1),
        'self_wo': nrm(ks[6], (E, E)),
        'self_bo': jnp.zeros((1, E), jnp.float32),
        'norm_g': jnp.ones((1, E), jnp.float32),
        'norm_b': jnp.zeros((1, E), jnp.float32),
        # cross attention
        'cross_wq': bdiag(wq_c),
        'cross_wk': bdiag(wk_c),
        'cross_wv': bdiag(wv_c),
        'cross_wo': nrm(ks[7], (E, E)),
        'cross_bo': jnp.zeros((1, E), jnp.float32),
        'norm1_g': jnp.ones((1, E), jnp.float32),
        'norm1_b': jnp.zeros((1, E), jnp.float32),
        # feed forward
        'ff_w1': nrm(ks[8], (E, F)), 'ff_b1': jnp.zeros((1, F), jnp.float32),
        'ff_w2': nrm(ks[9], (F, E)), 'ff_b2': jnp.zeros((1, E), jnp.float32),
        'norm2_g': jnp.ones((1, E), jnp.float32),
        'norm2_b': jnp.zeros((1, E), jnp.float32),
    }


# --------------------------------- main ---------------------------------------

if __name__ == "__main__":
    embed_size = 32
    heads = 4
    forward_expansion = 2
    N, trg_len, src_len = 2, 8, 8

    key = jax.random.PRNGKey(0)
    kp, kx, ke = jax.random.split(key, 3)
    params = init_decoder_block_params(kp, embed_size, heads, forward_expansion)

    x = jax.random.normal(kx, (N, trg_len, embed_size), jnp.float32)
    enc_out = jax.random.normal(ke, (N, src_len, embed_size), jnp.float32)
    src_mask = jnp.ones((N, 1, 1, src_len), jnp.float32)
    trg_mask = jnp.broadcast_to(
        jnp.tril(jnp.ones((trg_len, trg_len), jnp.float32))[None, None],
        (N, 1, trg_len, trg_len))

    fwd = jax.jit(functools.partial(decoder_block_forward, heads=heads))
    out = fwd(params, x, enc_out, enc_out, src_mask, trg_mask)
    jax.block_until_ready(out)
    assert out.shape == (N, trg_len, embed_size)
    assert bool(jnp.all(jnp.isfinite(out)))
    print("KERNEL_OK")
</pallas_src>

<mosaic_0001>
module attributes {stable_mosaic.version = 11 : i64} {
  func.func @_decoder_block_kernel(%arg0: i32, %arg1: memref<1x8x32xf32, #tpu.memory_space<vmem>>, %arg2: memref<1x8x32xf32, #tpu.memory_space<vmem>>, %arg3: memref<1x8x32xf32, #tpu.memory_space<vmem>>, %arg4: memref<1x8x8xi32, #tpu.memory_space<vmem>>, %arg5: memref<1x8x8xi32, #tpu.memory_space<vmem>>, %arg6: memref<32x96xf32, #tpu.memory_space<vmem>>, %arg7: memref<32x32xf32, #tpu.memory_space<vmem>>, %arg8: memref<1x32xf32, #tpu.memory_space<vmem>>, %arg9: memref<1x32xf32, #tpu.memory_space<vmem>>, %arg10: memref<1x32xf32, #tpu.memory_space<vmem>>, %arg11: memref<32x32xf32, #tpu.memory_space<vmem>>, %arg12: memref<32x32xf32, #tpu.memory_space<vmem>>, %arg13: memref<32x32xf32, #tpu.memory_space<vmem>>, %arg14: memref<32x32xf32, #tpu.memory_space<vmem>>, %arg15: memref<1x32xf32, #tpu.memory_space<vmem>>, %arg16: memref<1x32xf32, #tpu.memory_space<vmem>>, %arg17: memref<1x32xf32, #tpu.memory_space<vmem>>, %arg18: memref<32x64xf32, #tpu.memory_space<vmem>>, %arg19: memref<1x64xf32, #tpu.memory_space<vmem>>, %arg20: memref<64x32xf32, #tpu.memory_space<vmem>>, %arg21: memref<1x32xf32, #tpu.memory_space<vmem>>, %arg22: memref<1x32xf32, #tpu.memory_space<vmem>>, %arg23: memref<1x32xf32, #tpu.memory_space<vmem>>, %arg24: memref<1x8x32xf32, #tpu.memory_space<vmem>>) attributes {dimension_semantics = [#tpu.dimension_semantics<parallel>], iteration_bounds = array<i64: 2>, scalar_prefetch = 0 : i64, scratch_operands = 0 : i64, tpu.core_type = #tpu.core_type<tc>, window_params = [{transform_indices = @transform_0, window_bounds = array<i64: 1, 8, 32>}, {transform_indices = @transform_1, window_bounds = array<i64: 1, 8, 32>}, {transform_indices = @transform_2, window_bounds = array<i64: 1, 8, 32>}, {transform_indices = @transform_3, window_bounds = array<i64: 1, 8, 8>}, {transform_indices = @transform_4, window_bounds = array<i64: 1, 8, 8>}, {pipeline_mode = #tpu.pipeline_mode<synchronous>, transform_indices = @transform_5, window_bounds = array<i64: 32, 96>}, {pipeline_mode = #tpu.pipeline_mode<synchronous>, transform_indices = @transform_6, window_bounds = array<i64: 32, 32>}, {pipeline_mode = #tpu.pipeline_mode<synchronous>, transform_indices = @transform_7, window_bounds = array<i64: 1, 32>}, {pipeline_mode = #tpu.pipeline_mode<synchronous>, transform_indices = @transform_8, window_bounds = array<i64: 1, 32>}, {pipeline_mode = #tpu.pipeline_mode<synchronous>, transform_indices = @transform_9, window_bounds = array<i64: 1, 32>}, {pipeline_mode = #tpu.pipeline_mode<synchronous>, transform_indices = @transform_10, window_bounds = array<i64: 32, 32>}, {pipeline_mode = #tpu.pipeline_mode<synchronous>, transform_indices = @transform_11, window_bounds = array<i64: 32, 32>}, {pipeline_mode = #tpu.pipeline_mode<synchronous>, transform_indices = @transform_12, window_bounds = array<i64: 32, 32>}, {pipeline_mode = #tpu.pipeline_mode<synchronous>, transform_indices = @transform_13, window_bounds = array<i64: 32, 32>}, {pipeline_mode = #tpu.pipeline_mode<synchronous>, transform_indices = @transform_14, window_bounds = array<i64: 1, 32>}, {pipeline_mode = #tpu.pipeline_mode<synchronous>, transform_indices = @transform_15, window_bounds = array<i64: 1, 32>}, {pipeline_mode = #tpu.pipeline_mode<synchronous>, transform_indices = @transform_16, window_bounds = array<i64: 1, 32>}, {pipeline_mode = #tpu.pipeline_mode<synchronous>, transform_indices = @transform_17, window_bounds = array<i64: 32, 64>}, {pipeline_mode = #tpu.pipeline_mode<synchronous>, transform_indices = @transform_18, window_bounds = array<i64: 1, 64>}, {pipeline_mode = #tpu.pipeline_mode<synchronous>, transform_indices = @transform_19, window_bounds = array<i64: 64, 32>}, {pipeline_mode = #tpu.pipeline_mode<synchronous>, transform_indices = @transform_20, window_bounds = array<i64: 1, 32>}, {pipeline_mode = #tpu.pipeline_mode<synchronous>, transform_indices = @transform_21, window_bounds = array<i64: 1, 32>}, {pipeline_mode = #tpu.pipeline_mode<synchronous>, transform_indices = @transform_22, window_bounds = array<i64: 1, 32>}, {transform_indices = @transform_23, window_bounds = array<i64: 1, 8, 32>}]} {
    %c0 = arith.constant 0 : index
    %c0_0 = arith.constant 0 : index
    %c0_1 = arith.constant 0 : index
    %0 = vector.load %arg1[%c0, %c0_0, %c0_1] : memref<1x8x32xf32, #tpu.memory_space<vmem>>, vector<1x8x32xf32>
    %1 = vector.shape_cast %0 : vector<1x8x32xf32> to vector<8x32xf32>
    %c0_2 = arith.constant 0 : index
    %c0_3 = arith.constant 0 : index
    %c0_4 = arith.constant 0 : index
    %2 = vector.load %arg2[%c0_2, %c0_3, %c0_4] : memref<1x8x32xf32, #tpu.memory_space<vmem>>, vector<1x8x32xf32>
    %3 = vector.shape_cast %2 : vector<1x8x32xf32> to vector<8x32xf32>
    %c0_5 = arith.constant 0 : index
    %c0_6 = arith.constant 0 : index
    %c0_7 = arith.constant 0 : index
    %4 = vector.load %arg3[%c0_5, %c0_6, %c0_7] : memref<1x8x32xf32, #tpu.memory_space<vmem>>, vector<1x8x32xf32>
    %5 = vector.shape_cast %4 : vector<1x8x32xf32> to vector<8x32xf32>
    %c0_8 = arith.constant 0 : index
    %c0_9 = arith.constant 0 : index
    %c0_10 = arith.constant 0 : index
    %6 = vector.load %arg4[%c0_8, %c0_9, %c0_10] : memref<1x8x8xi32, #tpu.memory_space<vmem>>, vector<1x8x8xi32>
    %7 = vector.shape_cast %6 : vector<1x8x8xi32> to vector<8x8xi32>
    %c0_11 = arith.constant 0 : index
    %c0_12 = arith.constant 0 : index
    %c0_13 = arith.constant 0 : index
    %8 = vector.load %arg5[%c0_11, %c0_12, %c0_13] : memref<1x8x8xi32, #tpu.memory_space<vmem>>, vector<1x8x8xi32>
    %9 = vector.shape_cast %8 : vector<1x8x8xi32> to vector<8x8xi32>
    %c0_14 = arith.constant 0 : index
    %c0_15 = arith.constant 0 : index
    %10 = vector.load %arg6[%c0_14, %c0_15] : memref<32x96xf32, #tpu.memory_space<vmem>>, vector<32x96xf32>
    %cst = arith.constant dense<0.000000e+00> : vector<8x96xf32>
    %11 = tpu.matmul %1, %10, %cst {dimension_numbers = #tpu.dot_dimension_numbers<[1], [0], [0], [1], [0, 0, 1, 1], [], []>} : vector<8x32xf32>, vector<32x96xf32>, vector<8x96xf32> -> vector<8x96xf32>
    %12 = vector.extract_strided_slice %11 {offsets = [0, 0], sizes = [8, 32], strides = [1, 1]} : vector<8x96xf32> to vector<8x32xf32>
    %13 = vector.extract_strided_slice %11 {offsets = [0, 32], sizes = [8, 32], strides = [1, 1]} : vector<8x96xf32> to vector<8x32xf32>
    %14 = vector.extract_strided_slice %11 {offsets = [0, 64], sizes = [8, 32], strides = [1, 1]} : vector<8x96xf32> to vector<8x32xf32>
    %c0_16 = arith.constant 0 : index
    %c0_17 = arith.constant 0 : index
    %15 = vector.load %arg7[%c0_16, %c0_17] : memref<32x32xf32, #tpu.memory_space<vmem>>, vector<32x32xf32>
    %c0_18 = arith.constant 0 : index
    %c0_19 = arith.constant 0 : index
    %16 = vector.load %arg8[%c0_18, %c0_19] : memref<1x32xf32, #tpu.memory_space<vmem>>, vector<1x32xf32>
    %17 = vector.extract_strided_slice %12 {offsets = [0, 0], sizes = [8, 8], strides = [1, 1]} : vector<8x32xf32> to vector<8x8xf32>
    %18 = vector.extract_strided_slice %13 {offsets = [0, 0], sizes = [8, 8], strides = [1, 1]} : vector<8x32xf32> to vector<8x8xf32>
    %19 = vector.extract_strided_slice %14 {offsets = [0, 0], sizes = [8, 8], strides = [1, 1]} : vector<8x32xf32> to vector<8x8xf32>
    %cst_20 = arith.constant dense<0.000000e+00> : vector<8x8xf32>
    %20 = tpu.matmul %17, %18, %cst_20 {dimension_numbers = #tpu.dot_dimension_numbers<[1], [1], [0], [0], [0, 0, 1, 0], [], []>} : vector<8x8xf32>, vector<8x8xf32>, vector<8x8xf32> -> vector<8x8xf32>
    %c0_i32 = arith.constant 0 : i32
    %21 = vector.broadcast %c0_i32 : i32 to vector<8x8xi32>
    %22 = arith.cmpi eq, %9, %21 : vector<8x8xi32>
    %cst_21 = arith.constant -1.000000e+20 : f32
    %23 = vector.broadcast %cst_21 : f32 to vector<8x8xf32>
    %24 = arith.select %22, %23, %20 : vector<8x8xi1>, vector<8x8xf32>
    %cst_22 = arith.constant 0.176776692 : f32
    %25 = vector.broadcast %cst_22 : f32 to vector<8x8xf32>
    %26 = arith.mulf %24, %25 : vector<8x8xf32>
    %cst_23 = arith.constant dense<0xFF800000> : vector<8xf32>
    %27 = vector.multi_reduction <maximumf>, %26, %cst_23 [1] : vector<8x8xf32> to vector<8xf32>
    %28 = vector.shape_cast %27 : vector<8xf32> to vector<8x1xf32>
    %29 = vector.broadcast %28 : vector<8x1xf32> to vector<8x8xf32>
    %30 = arith.subf %26, %29 : vector<8x8xf32>
    %31 = math.exp %30 : vector<8x8xf32>
    %cst_24 = arith.constant dense<0.000000e+00> : vector<8xf32>
    %32 = vector.multi_reduction <add>, %31, %cst_24 [1] : vector<8x8xf32> to vector<8xf32>
    %33 = vector.shape_cast %32 : vector<8xf32> to vector<8x1xf32>
    %34 = tpu.reciprocal %33 {approx = true} : vector<8x1xf32> -> vector<8x1xf32>
    %35 = vector.broadcast %34 : vector<8x1xf32> to vector<8x8xf32>
    %36 = arith.mulf %31, %35 : vector<8x8xf32>
    %cst_25 = arith.constant dense<0.000000e+00> : vector<8x8xf32>
    %37 = tpu.matmul %36, %19, %cst_25 {dimension_numbers = #tpu.dot_dimension_numbers<[1], [0], [0], [1], [0, 0, 1, 1], [], []>} : vector<8x8xf32>, vector<8x8xf32>, vector<8x8xf32> -> vector<8x8xf32>
    %38 = vector.extract_strided_slice %12 {offsets = [0, 8], sizes = [8, 8], strides = [1, 1]} : vector<8x32xf32> to vector<8x8xf32>
    %39 = vector.extract_strided_slice %13 {offsets = [0, 8], sizes = [8, 8], strides = [1, 1]} : vector<8x32xf32> to vector<8x8xf32>
    %40 = vector.extract_strided_slice %14 {offsets = [0, 8], sizes = [8, 8], strides = [1, 1]} : vector<8x32xf32> to vector<8x8xf32>
    %cst_26 = arith.constant dense<0.000000e+00> : vector<8x8xf32>
    %41 = tpu.matmul %38, %39, %cst_26 {dimension_numbers = #tpu.dot_dimension_numbers<[1], [1], [0], [0], [0, 0, 1, 0], [], []>} : vector<8x8xf32>, vector<8x8xf32>, vector<8x8xf32> -> vector<8x8xf32>
    %c0_i32_27 = arith.constant 0 : i32
    %42 = vector.broadcast %c0_i32_27 : i32 to vector<8x8xi32>
    %43 = arith.cmpi eq, %9, %42 : vector<8x8xi32>
    %cst_28 = arith.constant -1.000000e+20 : f32
    %44 = vector.broadcast %cst_28 : f32 to vector<8x8xf32>
    %45 = arith.select %43, %44, %41 : vector<8x8xi1>, vector<8x8xf32>
    %cst_29 = arith.constant 0.176776692 : f32
    %46 = vector.broadcast %cst_29 : f32 to vector<8x8xf32>
    %47 = arith.mulf %45, %46 : vector<8x8xf32>
    %cst_30 = arith.constant dense<0xFF800000> : vector<8xf32>
    %48 = vector.multi_reduction <maximumf>, %47, %cst_30 [1] : vector<8x8xf32> to vector<8xf32>
    %49 = vector.shape_cast %48 : vector<8xf32> to vector<8x1xf32>
    %50 = vector.broadcast %49 : vector<8x1xf32> to vector<8x8xf32>
    %51 = arith.subf %47, %50 : vector<8x8xf32>
    %52 = math.exp %51 : vector<8x8xf32>
    %cst_31 = arith.constant dense<0.000000e+00> : vector<8xf32>
    %53 = vector.multi_reduction <add>, %52, %cst_31 [1] : vector<8x8xf32> to vector<8xf32>
    %54 = vector.shape_cast %53 : vector<8xf32> to vector<8x1xf32>
    %55 = tpu.reciprocal %54 {approx = true} : vector<8x1xf32> -> vector<8x1xf32>
    %56 = vector.broadcast %55 : vector<8x1xf32> to vector<8x8xf32>
    %57 = arith.mulf %52, %56 : vector<8x8xf32>
    %cst_32 = arith.constant dense<0.000000e+00> : vector<8x8xf32>
    %58 = tpu.matmul %57, %40, %cst_32 {dimension_numbers = #tpu.dot_dimension_numbers<[1], [0], [0], [1], [0, 0, 1, 1], [], []>} : vector<8x8xf32>, vector<8x8xf32>, vector<8x8xf32> -> vector<8x8xf32>
    %59 = vector.extract_strided_slice %12 {offsets = [0, 16], sizes = [8, 8], strides = [1, 1]} : vector<8x32xf32> to vector<8x8xf32>
    %60 = vector.extract_strided_slice %13 {offsets = [0, 16], sizes = [8, 8], strides = [1, 1]} : vector<8x32xf32> to vector<8x8xf32>
    %61 = vector.extract_strided_slice %14 {offsets = [0, 16], sizes = [8, 8], strides = [1, 1]} : vector<8x32xf32> to vector<8x8xf32>
    %cst_33 = arith.constant dense<0.000000e+00> : vector<8x8xf32>
    %62 = tpu.matmul %59, %60, %cst_33 {dimension_numbers = #tpu.dot_dimension_numbers<[1], [1], [0], [0], [0, 0, 1, 0], [], []>} : vector<8x8xf32>, vector<8x8xf32>, vector<8x8xf32> -> vector<8x8xf32>
    %c0_i32_34 = arith.constant 0 : i32
    %63 = vector.broadcast %c0_i32_34 : i32 to vector<8x8xi32>
    %64 = arith.cmpi eq, %9, %63 : vector<8x8xi32>
    %cst_35 = arith.constant -1.000000e+20 : f32
    %65 = vector.broadcast %cst_35 : f32 to vector<8x8xf32>
    %66 = arith.select %64, %65, %62 : vector<8x8xi1>, vector<8x8xf32>
    %cst_36 = arith.constant 0.176776692 : f32
    %67 = vector.broadcast %cst_36 : f32 to vector<8x8xf32>
    %68 = arith.mulf %66, %67 : vector<8x8xf32>
    %cst_37 = arith.constant dense<0xFF800000> : vector<8xf32>
    %69 = vector.multi_reduction <maximumf>, %68, %cst_37 [1] : vector<8x8xf32> to vector<8xf32>
    %70 = vector.shape_cast %69 : vector<8xf32> to vector<8x1xf32>
    %71 = vector.broadcast %70 : vector<8x1xf32> to vector<8x8xf32>
    %72 = arith.subf %68, %71 : vector<8x8xf32>
    %73 = math.exp %72 : vector<8x8xf32>
    %cst_38 = arith.constant dense<0.000000e+00> : vector<8xf32>
    %74 = vector.multi_reduction <add>, %73, %cst_38 [1] : vector<8x8xf32> to vector<8xf32>
    %75 = vector.shape_cast %74 : vector<8xf32> to vector<8x1xf32>
    %76 = tpu.reciprocal %75 {approx = true} : vector<8x1xf32> -> vector<8x1xf32>
    %77 = vector.broadcast %76 : vector<8x1xf32> to vector<8x8xf32>
    %78 = arith.mulf %73, %77 : vector<8x8xf32>
    %cst_39 = arith.constant dense<0.000000e+00> : vector<8x8xf32>
    %79 = tpu.matmul %78, %61, %cst_39 {dimension_numbers = #tpu.dot_dimension_numbers<[1], [0], [0], [1], [0, 0, 1, 1], [], []>} : vector<8x8xf32>, vector<8x8xf32>, vector<8x8xf32> -> vector<8x8xf32>
    %80 = vector.extract_strided_slice %12 {offsets = [0, 24], sizes = [8, 8], strides = [1, 1]} : vector<8x32xf32> to vector<8x8xf32>
    %81 = vector.extract_strided_slice %13 {offsets = [0, 24], sizes = [8, 8], strides = [1, 1]} : vector<8x32xf32> to vector<8x8xf32>
    %82 = vector.extract_strided_slice %14 {offsets = [0, 24], sizes = [8, 8], strides = [1, 1]} : vector<8x32xf32> to vector<8x8xf32>
    %cst_40 = arith.constant dense<0.000000e+00> : vector<8x8xf32>
    %83 = tpu.matmul %80, %81, %cst_40 {dimension_numbers = #tpu.dot_dimension_numbers<[1], [1], [0], [0], [0, 0, 1, 0], [], []>} : vector<8x8xf32>, vector<8x8xf32>, vector<8x8xf32> -> vector<8x8xf32>
    %c0_i32_41 = arith.constant 0 : i32
    %84 = vector.broadcast %c0_i32_41 : i32 to vector<8x8xi32>
    %85 = arith.cmpi eq, %9, %84 : vector<8x8xi32>
    %cst_42 = arith.constant -1.000000e+20 : f32
    %86 = vector.broadcast %cst_42 : f32 to vector<8x8xf32>
    %87 = arith.select %85, %86, %83 : vector<8x8xi1>, vector<8x8xf32>
    %cst_43 = arith.constant 0.176776692 : f32
    %88 = vector.broadcast %cst_43 : f32 to vector<8x8xf32>
    %89 = arith.mulf %87, %88 : vector<8x8xf32>
    %cst_44 = arith.constant dense<0xFF800000> : vector<8xf32>
    %90 = vector.multi_reduction <maximumf>, %89, %cst_44 [1] : vector<8x8xf32> to vector<8xf32>
    %91 = vector.shape_cast %90 : vector<8xf32> to vector<8x1xf32>
    %92 = vector.broadcast %91 : vector<8x1xf32> to vector<8x8xf32>
    %93 = arith.subf %89, %92 : vector<8x8xf32>
    %94 = math.exp %93 : vector<8x8xf32>
    %cst_45 = arith.constant dense<0.000000e+00> : vector<8xf32>
    %95 = vector.multi_reduction <add>, %94, %cst_45 [1] : vector<8x8xf32> to vector<8xf32>
    %96 = vector.shape_cast %95 : vector<8xf32> to vector<8x1xf32>
    %97 = tpu.reciprocal %96 {approx = true} : vector<8x1xf32> -> vector<8x1xf32>
    %98 = vector.broadcast %97 : vector<8x1xf32> to vector<8x8xf32>
    %99 = arith.mulf %94, %98 : vector<8x8xf32>
    %cst_46 = arith.constant dense<0.000000e+00> : vector<8x8xf32>
    %100 = tpu.matmul %99, %82, %cst_46 {dimension_numbers = #tpu.dot_dimension_numbers<[1], [0], [0], [1], [0, 0, 1, 1], [], []>} : vector<8x8xf32>, vector<8x8xf32>, vector<8x8xf32> -> vector<8x8xf32>
    %101 = tpu.concatenate %37, %58, %79, %100 in 1 : vector<8x8xf32>, vector<8x8xf32>, vector<8x8xf32>, vector<8x8xf32> -> vector<8x32xf32>
    %cst_47 = arith.constant dense<0.000000e+00> : vector<8x32xf32>
    %102 = tpu.matmul %101, %15, %cst_47 {dimension_numbers = #tpu.dot_dimension_numbers<[1], [0], [0], [1], [0, 0, 1, 1], [], []>} : vector<8x32xf32>, vector<32x32xf32>, vector<8x32xf32> -> vector<8x32xf32>
    %103 = vector.broadcast %16 : vector<1x32xf32> to vector<8x32xf32>
    %104 = arith.addf %102, %103 : vector<8x32xf32>
    %105 = arith.addf %104, %1 : vector<8x32xf32>
    %c0_48 = arith.constant 0 : index
    %c0_49 = arith.constant 0 : index
    %106 = vector.load %arg9[%c0_48, %c0_49] : memref<1x32xf32, #tpu.memory_space<vmem>>, vector<1x32xf32>
    %c0_50 = arith.constant 0 : index
    %c0_51 = arith.constant 0 : index
    %107 = vector.load %arg10[%c0_50, %c0_51] : memref<1x32xf32, #tpu.memory_space<vmem>>, vector<1x32xf32>
    %cst_52 = arith.constant dense<0.000000e+00> : vector<8xf32>
    %108 = vector.multi_reduction <add>, %105, %cst_52 [1] : vector<8x32xf32> to vector<8xf32>
    %109 = vector.shape_cast %108 : vector<8xf32> to vector<8x1xf32>
    %cst_53 = arith.constant 3.200000e+01 : f32
    %110 = vector.broadcast %cst_53 : f32 to vector<8x1xf32>
    %111 = arith.divf %109, %110 : vector<8x1xf32>
    %112 = vector.broadcast %111 : vector<8x1xf32> to vector<8x32xf32>
    %113 = arith.subf %105, %112 : vector<8x32xf32>
    %114 = arith.mulf %113, %113 : vector<8x32xf32>
    %cst_54 = arith.constant dense<0.000000e+00> : vector<8xf32>
    %115 = vector.multi_reduction <add>, %114, %cst_54 [1] : vector<8x32xf32> to vector<8xf32>
    %116 = vector.shape_cast %115 : vector<8xf32> to vector<8x1xf32>
    %cst_55 = arith.constant 3.200000e+01 : f32
    %117 = vector.broadcast %cst_55 : f32 to vector<8x1xf32>
    %118 = arith.divf %116, %117 : vector<8x1xf32>
    %119 = vector.broadcast %111 : vector<8x1xf32> to vector<8x32xf32>
    %120 = arith.subf %105, %119 : vector<8x32xf32>
    %cst_56 = arith.constant 9.99999974E-6 : f32
    %121 = vector.broadcast %cst_56 : f32 to vector<8x1xf32>
    %122 = arith.addf %118, %121 : vector<8x1xf32>
    %123 = math.rsqrt %122 : vector<8x1xf32>
    %124 = vector.broadcast %123 : vector<8x1xf32> to vector<8x32xf32>
    %125 = arith.mulf %120, %124 : vector<8x32xf32>
    %126 = vector.broadcast %106 : vector<1x32xf32> to vector<8x32xf32>
    %127 = arith.mulf %125, %126 : vector<8x32xf32>
    %128 = vector.broadcast %107 : vector<1x32xf32> to vector<8x32xf32>
    %129 = arith.addf %127, %128 : vector<8x32xf32>
    %c0_57 = arith.constant 0 : index
    %c0_58 = arith.constant 0 : index
    %130 = vector.load %arg11[%c0_57, %c0_58] : memref<32x32xf32, #tpu.memory_space<vmem>>, vector<32x32xf32>
    %cst_59 = arith.constant dense<0.000000e+00> : vector<8x32xf32>
    %131 = tpu.matmul %129, %130, %cst_59 {dimension_numbers = #tpu.dot_dimension_numbers<[1], [0], [0], [1], [0, 0, 1, 1], [], []>} : vector<8x32xf32>, vector<32x32xf32>, vector<8x32xf32> -> vector<8x32xf32>
    %c0_60 = arith.constant 0 : index
    %c0_61 = arith.constant 0 : index
    %132 = vector.load %arg12[%c0_60, %c0_61] : memref<32x32xf32, #tpu.memory_space<vmem>>, vector<32x32xf32>
    %cst_62 = arith.constant dense<0.000000e+00> : vector<8x32xf32>
    %133 = tpu.matmul %5, %132, %cst_62 {dimension_numbers = #tpu.dot_dimension_numbers<[1], [0], [0], [1], [0, 0, 1, 1], [], []>} : vector<8x32xf32>, vector<32x32xf32>, vector<8x32xf32> -> vector<8x32xf32>
    %c0_63 = arith.constant 0 : index
    %c0_64 = arith.constant 0 : index
    %134 = vector.load %arg13[%c0_63, %c0_64] : memref<32x32xf32, #tpu.memory_space<vmem>>, vector<32x32xf32>
    %cst_65 = arith.constant dense<0.000000e+00> : vector<8x32xf32>
    %135 = tpu.matmul %3, %134, %cst_65 {dimension_numbers = #tpu.dot_dimension_numbers<[1], [0], [0], [1], [0, 0, 1, 1], [], []>} : vector<8x32xf32>, vector<32x32xf32>, vector<8x32xf32> -> vector<8x32xf32>
    %c0_66 = arith.constant 0 : index
    %c0_67 = arith.constant 0 : index
    %136 = vector.load %arg14[%c0_66, %c0_67] : memref<32x32xf32, #tpu.memory_space<vmem>>, vector<32x32xf32>
    %c0_68 = arith.constant 0 : index
    %c0_69 = arith.constant 0 : index
    %137 = vector.load %arg15[%c0_68, %c0_69] : memref<1x32xf32, #tpu.memory_space<vmem>>, vector<1x32xf32>
    %138 = vector.extract_strided_slice %131 {offsets = [0, 0], sizes = [8, 8], strides = [1, 1]} : vector<8x32xf32> to vector<8x8xf32>
    %139 = vector.extract_strided_slice %133 {offsets = [0, 0], sizes = [8, 8], strides = [1, 1]} : vector<8x32xf32> to vector<8x8xf32>
    %140 = vector.extract_strided_slice %135 {offsets = [0, 0], sizes = [8, 8], strides = [1, 1]} : vector<8x32xf32> to vector<8x8xf32>
    %cst_70 = arith.constant dense<0.000000e+00> : vector<8x8xf32>
    %141 = tpu.matmul %138, %139, %cst_70 {dimension_numbers = #tpu.dot_dimension_numbers<[1], [1], [0], [0], [0, 0, 1, 0], [], []>} : vector<8x8xf32>, vector<8x8xf32>, vector<8x8xf32> -> vector<8x8xf32>
    %c0_i32_71 = arith.constant 0 : i32
    %142 = vector.broadcast %c0_i32_71 : i32 to vector<8x8xi32>
    %143 = arith.cmpi eq, %7, %142 : vector<8x8xi32>
    %cst_72 = arith.constant -1.000000e+20 : f32
    %144 = vector.broadcast %cst_72 : f32 to vector<8x8xf32>
    %145 = arith.select %143, %144, %141 : vector<8x8xi1>, vector<8x8xf32>
    %cst_73 = arith.constant 0.176776692 : f32
    %146 = vector.broadcast %cst_73 : f32 to vector<8x8xf32>
    %147 = arith.mulf %145, %146 : vector<8x8xf32>
    %cst_74 = arith.constant dense<0xFF800000> : vector<8xf32>
    %148 = vector.multi_reduction <maximumf>, %147, %cst_74 [1] : vector<8x8xf32> to vector<8xf32>
    %149 = vector.shape_cast %148 : vector<8xf32> to vector<8x1xf32>
    %150 = vector.broadcast %149 : vector<8x1xf32> to vector<8x8xf32>
    %151 = arith.subf %147, %150 : vector<8x8xf32>
    %152 = math.exp %151 : vector<8x8xf32>
    %cst_75 = arith.constant dense<0.000000e+00> : vector<8xf32>
    %153 = vector.multi_reduction <add>, %152, %cst_75 [1] : vector<8x8xf32> to vector<8xf32>
    %154 = vector.shape_cast %153 : vector<8xf32> to vector<8x1xf32>
    %155 = tpu.reciprocal %154 {approx = true} : vector<8x1xf32> -> vector<8x1xf32>
    %156 = vector.broadcast %155 : vector<8x1xf32> to vector<8x8xf32>
    %157 = arith.mulf %152, %156 : vector<8x8xf32>
    %cst_76 = arith.constant dense<0.000000e+00> : vector<8x8xf32>
    %158 = tpu.matmul %157, %140, %cst_76 {dimension_numbers = #tpu.dot_dimension_numbers<[1], [0], [0], [1], [0, 0, 1, 1], [], []>} : vector<8x8xf32>, vector<8x8xf32>, vector<8x8xf32> -> vector<8x8xf32>
    %159 = vector.extract_strided_slice %131 {offsets = [0, 8], sizes = [8, 8], strides = [1, 1]} : vector<8x32xf32> to vector<8x8xf32>
    %160 = vector.extract_strided_slice %133 {offsets = [0, 8], sizes = [8, 8], strides = [1, 1]} : vector<8x32xf32> to vector<8x8xf32>
    %161 = vector.extract_strided_slice %135 {offsets = [0, 8], sizes = [8, 8], strides = [1, 1]} : vector<8x32xf32> to vector<8x8xf32>
    %cst_77 = arith.constant dense<0.000000e+00> : vector<8x8xf32>
    %162 = tpu.matmul %159, %160, %cst_77 {dimension_numbers = #tpu.dot_dimension_numbers<[1], [1], [0], [0], [0, 0, 1, 0], [], []>} : vector<8x8xf32>, vector<8x8xf32>, vector<8x8xf32> -> vector<8x8xf32>
    %c0_i32_78 = arith.constant 0 : i32
    %163 = vector.broadcast %c0_i32_78 : i32 to vector<8x8xi32>
    %164 = arith.cmpi eq, %7, %163 : vector<8x8xi32>
    %cst_79 = arith.constant -1.000000e+20 : f32
    %165 = vector.broadcast %cst_79 : f32 to vector<8x8xf32>
    %166 = arith.select %164, %165, %162 : vector<8x8xi1>, vector<8x8xf32>
    %cst_80 = arith.constant 0.176776692 : f32
    %167 = vector.broadcast %cst_80 : f32 to vector<8x8xf32>
    %168 = arith.mulf %166, %167 : vector<8x8xf32>
    %cst_81 = arith.constant dense<0xFF800000> : vector<8xf32>
    %169 = vector.multi_reduction <maximumf>, %168, %cst_81 [1] : vector<8x8xf32> to vector<8xf32>
    %170 = vector.shape_cast %169 : vector<8xf32> to vector<8x1xf32>
    %171 = vector.broadcast %170 : vector<8x1xf32> to vector<8x8xf32>
    %172 = arith.subf %168, %171 : vector<8x8xf32>
    %173 = math.exp %172 : vector<8x8xf32>
    %cst_82 = arith.constant dense<0.000000e+00> : vector<8xf32>
    %174 = vector.multi_reduction <add>, %173, %cst_82 [1] : vector<8x8xf32> to vector<8xf32>
    %175 = vector.shape_cast %174 : vector<8xf32> to vector<8x1xf32>
    %176 = tpu.reciprocal %175 {approx = true} : vector<8x1xf32> -> vector<8x1xf32>
    %177 = vector.broadcast %176 : vector<8x1xf32> to vector<8x8xf32>
    %178 = arith.mulf %173, %177 : vector<8x8xf32>
    %cst_83 = arith.constant dense<0.000000e+00> : vector<8x8xf32>
    %179 = tpu.matmul %178, %161, %cst_83 {dimension_numbers = #tpu.dot_dimension_numbers<[1], [0], [0], [1], [0, 0, 1, 1], [], []>} : vector<8x8xf32>, vector<8x8xf32>, vector<8x8xf32> -> vector<8x8xf32>
    %180 = vector.extract_strided_slice %131 {offsets = [0, 16], sizes = [8, 8], strides = [1, 1]} : vector<8x32xf32> to vector<8x8xf32>
    %181 = vector.extract_strided_slice %133 {offsets = [0, 16], sizes = [8, 8], strides = [1, 1]} : vector<8x32xf32> to vector<8x8xf32>
    %182 = vector.extract_strided_slice %135 {offsets = [0, 16], sizes = [8, 8], strides = [1, 1]} : vector<8x32xf32> to vector<8x8xf32>
    %cst_84 = arith.constant dense<0.000000e+00> : vector<8x8xf32>
    %183 = tpu.matmul %180, %181, %cst_84 {dimension_numbers = #tpu.dot_dimension_numbers<[1], [1], [0], [0], [0, 0, 1, 0], [], []>} : vector<8x8xf32>, vector<8x8xf32>, vector<8x8xf32> -> vector<8x8xf32>
    %c0_i32_85 = arith.constant 0 : i32
    %184 = vector.broadcast %c0_i32_85 : i32 to vector<8x8xi32>
    %185 = arith.cmpi eq, %7, %184 : vector<8x8xi32>
    %cst_86 = arith.constant -1.000000e+20 : f32
    %186 = vector.broadcast %cst_86 : f32 to vector<8x8xf32>
    %187 = arith.select %185, %186, %183 : vector<8x8xi1>, vector<8x8xf32>
    %cst_87 = arith.constant 0.176776692 : f32
    %188 = vector.broadcast %cst_87 : f32 to vector<8x8xf32>
    %189 = arith.mulf %187, %188 : vector<8x8xf32>
    %cst_88 = arith.constant dense<0xFF800000> : vector<8xf32>
    %190 = vector.multi_reduction <maximumf>, %189, %cst_88 [1] : vector<8x8xf32> to vector<8xf32>
    %191 = vector.shape_cast %190 : vector<8xf32> to vector<8x1xf32>
    %192 = vector.broadcast %191 : vector<8x1xf32> to vector<8x8xf32>
    %193 = arith.subf %189, %192 : vector<8x8xf32>
    %194 = math.exp %193 : vector<8x8xf32>
    %cst_89 = arith.constant dense<0.000000e+00> : vector<8xf32>
    %195 = vector.multi_reduction <add>, %194, %cst_89 [1] : vector<8x8xf32> to vector<8xf32>
    %196 = vector.shape_cast %195 : vector<8xf32> to vector<8x1xf32>
    %197 = tpu.reciprocal %196 {approx = true} : vector<8x1xf32> -> vector<8x1xf32>
    %198 = vector.broadcast %197 : vector<8x1xf32> to vector<8x8xf32>
    %199 = arith.mulf %194, %198 : vector<8x8xf32>
    %cst_90 = arith.constant dense<0.000000e+00> : vector<8x8xf32>
    %200 = tpu.matmul %199, %182, %cst_90 {dimension_numbers = #tpu.dot_dimension_numbers<[1], [0], [0], [1], [0, 0, 1, 1], [], []>} : vector<8x8xf32>, vector<8x8xf32>, vector<8x8xf32> -> vector<8x8xf32>
    %201 = vector.extract_strided_slice %131 {offsets = [0, 24], sizes = [8, 8], strides = [1, 1]} : vector<8x32xf32> to vector<8x8xf32>
    %202 = vector.extract_strided_slice %133 {offsets = [0, 24], sizes = [8, 8], strides = [1, 1]} : vector<8x32xf32> to vector<8x8xf32>
    %203 = vector.extract_strided_slice %135 {offsets = [0, 24], sizes = [8, 8], strides = [1, 1]} : vector<8x32xf32> to vector<8x8xf32>
    %cst_91 = arith.constant dense<0.000000e+00> : vector<8x8xf32>
    %204 = tpu.matmul %201, %202, %cst_91 {dimension_numbers = #tpu.dot_dimension_numbers<[1], [1], [0], [0], [0, 0, 1, 0], [], []>} : vector<8x8xf32>, vector<8x8xf32>, vector<8x8xf32> -> vector<8x8xf32>
    %c0_i32_92 = arith.constant 0 : i32
    %205 = vector.broadcast %c0_i32_92 : i32 to vector<8x8xi32>
    %206 = arith.cmpi eq, %7, %205 : vector<8x8xi32>
    %cst_93 = arith.constant -1.000000e+20 : f32
    %207 = vector.broadcast %cst_93 : f32 to vector<8x8xf32>
    %208 = arith.select %206, %207, %204 : vector<8x8xi1>, vector<8x8xf32>
    %cst_94 = arith.constant 0.176776692 : f32
    %209 = vector.broadcast %cst_94 : f32 to vector<8x8xf32>
    %210 = arith.mulf %208, %209 : vector<8x8xf32>
    %cst_95 = arith.constant dense<0xFF800000> : vector<8xf32>
    %211 = vector.multi_reduction <maximumf>, %210, %cst_95 [1] : vector<8x8xf32> to vector<8xf32>
    %212 = vector.shape_cast %211 : vector<8xf32> to vector<8x1xf32>
    %213 = vector.broadcast %212 : vector<8x1xf32> to vector<8x8xf32>
    %214 = arith.subf %210, %213 : vector<8x8xf32>
    %215 = math.exp %214 : vector<8x8xf32>
    %cst_96 = arith.constant dense<0.000000e+00> : vector<8xf32>
    %216 = vector.multi_reduction <add>, %215, %cst_96 [1] : vector<8x8xf32> to vector<8xf32>
    %217 = vector.shape_cast %216 : vector<8xf32> to vector<8x1xf32>
    %218 = tpu.reciprocal %217 {approx = true} : vector<8x1xf32> -> vector<8x1xf32>
    %219 = vector.broadcast %218 : vector<8x1xf32> to vector<8x8xf32>
    %220 = arith.mulf %215, %219 : vector<8x8xf32>
    %cst_97 = arith.constant dense<0.000000e+00> : vector<8x8xf32>
    %221 = tpu.matmul %220, %203, %cst_97 {dimension_numbers = #tpu.dot_dimension_numbers<[1], [0], [0], [1], [0, 0, 1, 1], [], []>} : vector<8x8xf32>, vector<8x8xf32>, vector<8x8xf32> -> vector<8x8xf32>
    %222 = tpu.concatenate %158, %179, %200, %221 in 1 : vector<8x8xf32>, vector<8x8xf32>, vector<8x8xf32>, vector<8x8xf32> -> vector<8x32xf32>
    %cst_98 = arith.constant dense<0.000000e+00> : vector<8x32xf32>
    %223 = tpu.matmul %222, %136, %cst_98 {dimension_numbers = #tpu.dot_dimension_numbers<[1], [0], [0], [1], [0, 0, 1, 1], [], []>} : vector<8x32xf32>, vector<32x32xf32>, vector<8x32xf32> -> vector<8x32xf32>
    %224 = vector.broadcast %137 : vector<1x32xf32> to vector<8x32xf32>
    %225 = arith.addf %223, %224 : vector<8x32xf32>
    %226 = arith.addf %225, %129 : vector<8x32xf32>
    %c0_99 = arith.constant 0 : index
    %c0_100 = arith.constant 0 : index
    %227 = vector.load %arg16[%c0_99, %c0_100] : memref<1x32xf32, #tpu.memory_space<vmem>>, vector<1x32xf32>
    %c0_101 = arith.constant 0 : index
    %c0_102 = arith.constant 0 : index
    %228 = vector.load %arg17[%c0_101, %c0_102] : memref<1x32xf32, #tpu.memory_space<vmem>>, vector<1x32xf32>
    %cst_103 = arith.constant dense<0.000000e+00> : vector<8xf32>
    %229 = vector.multi_reduction <add>, %226, %cst_103 [1] : vector<8x32xf32> to vector<8xf32>
    %230 = vector.shape_cast %229 : vector<8xf32> to vector<8x1xf32>
    %cst_104 = arith.constant 3.200000e+01 : f32
    %231 = vector.broadcast %cst_104 : f32 to vector<8x1xf32>
    %232 = arith.divf %230, %231 : vector<8x1xf32>
    %233 = vector.broadcast %232 : vector<8x1xf32> to vector<8x32xf32>
    %234 = arith.subf %226, %233 : vector<8x32xf32>
    %235 = arith.mulf %234, %234 : vector<8x32xf32>
    %cst_105 = arith.constant dense<0.000000e+00> : vector<8xf32>
    %236 = vector.multi_reduction <add>, %235, %cst_105 [1] : vector<8x32xf32> to vector<8xf32>
    %237 = vector.shape_cast %236 : vector<8xf32> to vector<8x1xf32>
    %cst_106 = arith.constant 3.200000e+01 : f32
    %238 = vector.broadcast %cst_106 : f32 to vector<8x1xf32>
    %239 = arith.divf %237, %238 : vector<8x1xf32>
    %240 = vector.broadcast %232 : vector<8x1xf32> to vector<8x32xf32>
    %241 = arith.subf %226, %240 : vector<8x32xf32>
    %cst_107 = arith.constant 9.99999974E-6 : f32
    %242 = vector.broadcast %cst_107 : f32 to vector<8x1xf32>
    %243 = arith.addf %239, %242 : vector<8x1xf32>
    %244 = math.rsqrt %243 : vector<8x1xf32>
    %245 = vector.broadcast %244 : vector<8x1xf32> to vector<8x32xf32>
    %246 = arith.mulf %241, %245 : vector<8x32xf32>
    %247 = vector.broadcast %227 : vector<1x32xf32> to vector<8x32xf32>
    %248 = arith.mulf %246, %247 : vector<8x32xf32>
    %249 = vector.broadcast %228 : vector<1x32xf32> to vector<8x32xf32>
    %250 = arith.addf %248, %249 : vector<8x32xf32>
    %c0_108 = arith.constant 0 : index
    %c0_109 = arith.constant 0 : index
    %251 = vector.load %arg18[%c0_108, %c0_109] : memref<32x64xf32, #tpu.memory_space<vmem>>, vector<32x64xf32>
    %cst_110 = arith.constant dense<0.000000e+00> : vector<8x64xf32>
    %252 = tpu.matmul %250, %251, %cst_110 {dimension_numbers = #tpu.dot_dimension_numbers<[1], [0], [0], [1], [0, 0, 1, 1], [], []>} : vector<8x32xf32>, vector<32x64xf32>, vector<8x64xf32> -> vector<8x64xf32>
    %c0_111 = arith.constant 0 : index
    %c0_112 = arith.constant 0 : index
    %253 = vector.load %arg19[%c0_111, %c0_112] : memref<1x64xf32, #tpu.memory_space<vmem>>, vector<1x64xf32>
    %254 = vector.broadcast %253 : vector<1x64xf32> to vector<8x64xf32>
    %255 = arith.addf %252, %254 : vector<8x64xf32>
    %cst_113 = arith.constant 0.000000e+00 : f32
    %256 = vector.broadcast %cst_113 : f32 to vector<8x64xf32>
    %257 = arith.maximumf %255, %256 : vector<8x64xf32>
    %c0_114 = arith.constant 0 : index
    %c0_115 = arith.constant 0 : index
    %258 = vector.load %arg20[%c0_114, %c0_115] : memref<64x32xf32, #tpu.memory_space<vmem>>, vector<64x32xf32>
    %cst_116 = arith.constant dense<0.000000e+00> : vector<8x32xf32>
    %259 = tpu.matmul %257, %258, %cst_116 {dimension_numbers = #tpu.dot_dimension_numbers<[1], [0], [0], [1], [0, 0, 1, 1], [], []>} : vector<8x64xf32>, vector<64x32xf32>, vector<8x32xf32> -> vector<8x32xf32>
    %c0_117 = arith.constant 0 : index
    %c0_118 = arith.constant 0 : index
    %260 = vector.load %arg21[%c0_117, %c0_118] : memref<1x32xf32, #tpu.memory_space<vmem>>, vector<1x32xf32>
    %261 = vector.broadcast %260 : vector<1x32xf32> to vector<8x32xf32>
    %262 = arith.addf %259, %261 : vector<8x32xf32>
    %263 = arith.addf %262, %250 : vector<8x32xf32>
    %c0_119 = arith.constant 0 : index
    %c0_120 = arith.constant 0 : index
    %264 = vector.load %arg22[%c0_119, %c0_120] : memref<1x32xf32, #tpu.memory_space<vmem>>, vector<1x32xf32>
    %c0_121 = arith.constant 0 : index
    %c0_122 = arith.constant 0 : index
    %265 = vector.load %arg23[%c0_121, %c0_122] : memref<1x32xf32, #tpu.memory_space<vmem>>, vector<1x32xf32>
    %cst_123 = arith.constant dense<0.000000e+00> : vector<8xf32>
    %266 = vector.multi_reduction <add>, %263, %cst_123 [1] : vector<8x32xf32> to vector<8xf32>
    %267 = vector.shape_cast %266 : vector<8xf32> to vector<8x1xf32>
    %cst_124 = arith.constant 3.200000e+01 : f32
    %268 = vector.broadcast %cst_124 : f32 to vector<8x1xf32>
    %269 = arith.divf %267, %268 : vector<8x1xf32>
    %270 = vector.broadcast %269 : vector<8x1xf32> to vector<8x32xf32>
    %271 = arith.subf %263, %270 : vector<8x32xf32>
    %272 = arith.mulf %271, %271 : vector<8x32xf32>
    %cst_125 = arith.constant dense<0.000000e+00> : vector<8xf32>
    %273 = vector.multi_reduction <add>, %272, %cst_125 [1] : vector<8x32xf32> to vector<8xf32>
    %274 = vector.shape_cast %273 : vector<8xf32> to vector<8x1xf32>
    %cst_126 = arith.constant 3.200000e+01 : f32
    %275 = vector.broadcast %cst_126 : f32 to vector<8x1xf32>
    %276 = arith.divf %274, %275 : vector<8x1xf32>
    %277 = vector.broadcast %269 : vector<8x1xf32> to vector<8x32xf32>
    %278 = arith.subf %263, %277 : vector<8x32xf32>
    %cst_127 = arith.constant 9.99999974E-6 : f32
    %279 = vector.broadcast %cst_127 : f32 to vector<8x1xf32>
    %280 = arith.addf %276, %279 : vector<8x1xf32>
    %281 = math.rsqrt %280 : vector<8x1xf32>
    %282 = vector.broadcast %281 : vector<8x1xf32> to vector<8x32xf32>
    %283 = arith.mulf %278, %282 : vector<8x32xf32>
    %284 = vector.broadcast %264 : vector<1x32xf32> to vector<8x32xf32>
    %285 = arith.mulf %283, %284 : vector<8x32xf32>
    %286 = vector.broadcast %265 : vector<1x32xf32> to vector<8x32xf32>
    %287 = arith.addf %285, %286 : vector<8x32xf32>
    %c0_128 = arith.constant 0 : index
    %c0_129 = arith.constant 0 : index
    %c0_130 = arith.constant 0 : index
    %288 = vector.load %arg24[%c0_128, %c0_129, %c0_130] : memref<1x8x32xf32, #tpu.memory_space<vmem>>, vector<1x8x32xf32>
    %289 = vector.shape_cast %288 : vector<1x8x32xf32> to vector<8x32xf32>
    %290 = vector.shape_cast %287 : vector<8x32xf32> to vector<1x8x32xf32>
    tpu.vector_store %arg24[%c0_128, %c0_129, %c0_130], %290 {strides = array<i32>} : memref<1x8x32xf32, #tpu.memory_space<vmem>>, vector<1x8x32xf32>,
    return
  }
  func.func @transform_0(%arg0: i32) -> (i32, i32, i32) {
    %c0_i32 = arith.constant 0 : i32
    %c0_i32_0 = arith.constant 0 : i32
    %c0_i32_1 = arith.constant 0 : i32
    return %arg0, %c0_i32, %c0_i32_0 : i32, i32, i32
  }
  func.func @transform_1(%arg0: i32) -> (i32, i32, i32) {
    %c0_i32 = arith.constant 0 : i32
    %c0_i32_0 = arith.constant 0 : i32
    %c0_i32_1 = arith.constant 0 : i32
    return %arg0, %c0_i32, %c0_i32_0 : i32, i32, i32
  }
  func.func @transform_2(%arg0: i32) -> (i32, i32, i32) {
    %c0_i32 = arith.constant 0 : i32
    %c0_i32_0 = arith.constant 0 : i32
    %c0_i32_1 = arith.constant 0 : i32
    return %arg0, %c0_i32, %c0_i32_0 : i32, i32, i32
  }
  func.func @transform_3(%arg0: i32) -> (i32, i32, i32) {
    %c0_i32 = arith.constant 0 : i32
    %c0_i32_0 = arith.constant 0 : i32
    %c0_i32_1 = arith.constant 0 : i32
    return %arg0, %c0_i32, %c0_i32_0 : i32, i32, i32
  }
  func.func @transform_4(%arg0: i32) -> (i32, i32, i32) {
    %c0_i32 = arith.constant 0 : i32
    %c0_i32_0 = arith.constant 0 : i32
    %c0_i32_1 = arith.constant 0 : i32
    return %arg0, %c0_i32, %c0_i32_0 : i32, i32, i32
  }
  func.func @transform_5(%arg0: i32) -> (i32, i32) {
    %c0_i32 = arith.constant 0 : i32
    %c0_i32_0 = arith.constant 0 : i32
    %c0_i32_1 = arith.constant 0 : i32
    return %c0_i32, %c0_i32_0 : i32, i32
  }
  func.func @transform_6(%arg0: i32) -> (i32, i32) {
    %c0_i32 = arith.constant 0 : i32
    %c0_i32_0 = arith.constant 0 : i32
    %c0_i32_1 = arith.constant 0 : i32
    return %c0_i32, %c0_i32_0 : i32, i32
  }
  func.func @transform_7(%arg0: i32) -> (i32, i32) {
    %c0_i32 = arith.constant 0 : i32
    %c0_i32_0 = arith.constant 0 : i32
    %c0_i32_1 = arith.constant 0 : i32
    return %c0_i32, %c0_i32_0 : i32, i32
  }
  func.func @transform_8(%arg0: i32) -> (i32, i32) {
    %c0_i32 = arith.constant 0 : i32
    %c0_i32_0 = arith.constant 0 : i32
    %c0_i32_1 = arith.constant 0 : i32
    return %c0_i32, %c0_i32_0 : i32, i32
  }
  func.func @transform_9(%arg0: i32) -> (i32, i32) {
    %c0_i32 = arith.constant 0 : i32
    %c0_i32_0 = arith.constant 0 : i32
    %c0_i32_1 = arith.constant 0 : i32
    return %c0_i32, %c0_i32_0 : i32, i32
  }
  func.func @transform_10(%arg0: i32) -> (i32, i32) {
    %c0_i32 = arith.constant 0 : i32
    %c0_i32_0 = arith.constant 0 : i32
    %c0_i32_1 = arith.constant 0 : i32
    return %c0_i32, %c0_i32_0 : i32, i32
  }
  func.func @transform_11(%arg0: i32) -> (i32, i32) {
    %c0_i32 = arith.constant 0 : i32
    %c0_i32_0 = arith.constant 0 : i32
    %c0_i32_1 = arith.constant 0 : i32
    return %c0_i32, %c0_i32_0 : i32, i32
  }
  func.func @transform_12(%arg0: i32) -> (i32, i32) {
    %c0_i32 = arith.constant 0 : i32
    %c0_i32_0 = arith.constant 0 : i32
    %c0_i32_1 = arith.constant 0 : i32
    return %c0_i32, %c0_i32_0 : i32, i32
  }
  func.func @transform_13(%arg0: i32) -> (i32, i32) {
    %c0_i32 = arith.constant 0 : i32
    %c0_i32_0 = arith.constant 0 : i32
    %c0_i32_1 = arith.constant 0 : i32
    return %c0_i32, %c0_i32_0 : i32, i32
  }
  func.func @transform_14(%arg0: i32) -> (i32, i32) {
    %c0_i32 = arith.constant 0 : i32
    %c0_i32_0 = arith.constant 0 : i32
    %c0_i32_1 = arith.constant 0 : i32
    return %c0_i32, %c0_i32_0 : i32, i32
  }
  func.func @transform_15(%arg0: i32) -> (i32, i32) {
    %c0_i32 = arith.constant 0 : i32
    %c0_i32_0 = arith.constant 0 : i32
    %c0_i32_1 = arith.constant 0 : i32
    return %c0_i32, %c0_i32_0 : i32, i32
  }
  func.func @transform_16(%arg0: i32) -> (i32, i32) {
    %c0_i32 = arith.constant 0 : i32
    %c0_i32_0 = arith.constant 0 : i32
    %c0_i32_1 = arith.constant 0 : i32
    return %c0_i32, %c0_i32_0 : i32, i32
  }
  func.func @transform_17(%arg0: i32) -> (i32, i32) {
    %c0_i32 = arith.constant 0 : i32
    %c0_i32_0 = arith.constant 0 : i32
    %c0_i32_1 = arith.constant 0 : i32
    return %c0_i32, %c0_i32_0 : i32, i32
  }
  func.func @transform_18(%arg0: i32) -> (i32, i32) {
    %c0_i32 = arith.constant 0 : i32
    %c0_i32_0 = arith.constant 0 : i32
    %c0_i32_1 = arith.constant 0 : i32
    return %c0_i32, %c0_i32_0 : i32, i32
  }
  func.func @transform_19(%arg0: i32) -> (i32, i32) {
    %c0_i32 = arith.constant 0 : i32
    %c0_i32_0 = arith.constant 0 : i32
    %c0_i32_1 = arith.constant 0 : i32
    return %c0_i32, %c0_i32_0 : i32, i32
  }
  func.func @transform_20(%arg0: i32) -> (i32, i32) {
    %c0_i32 = arith.constant 0 : i32
    %c0_i32_0 = arith.constant 0 : i32
    %c0_i32_1 = arith.constant 0 : i32
    return %c0_i32, %c0_i32_0 : i32, i32
  }
  func.func @transform_21(%arg0: i32) -> (i32, i32) {
    %c0_i32 = arith.constant 0 : i32
    %c0_i32_0 = arith.constant 0 : i32
    %c0_i32_1 = arith.constant 0 : i32
    return %c0_i32, %c0_i32_0 : i32, i32
  }
  func.func @transform_22(%arg0: i32) -> (i32, i32) {
    %c0_i32 = arith.constant 0 : i32
    %c0_i32_0 = arith.constant 0 : i32
    %c0_i32_1 = arith.constant 0 : i32
    return %c0_i32, %c0_i32_0 : i32, i32
  }
  func.func @transform_23(%arg0: i32) -> (i32, i32, i32) {
    %c0_i32 = arith.constant 0 : i32
    %c0_i32_0 = arith.constant 0 : i32
    %c0_i32_1 = arith.constant 0 : i32
    return %arg0, %c0_i32, %c0_i32_0 : i32, i32, i32
  }
}

</mosaic_0001>

<llo_original>
// kernel: decoder_block_forward.1
$region0: #{decoder_block_forward.1}
  #allocation0 [shape = 'u32[]', space=smem, size = 0x4, offset = 0x4, fixed_abs, tag = 'smem constant byte address 0x4 - core index']
  #allocation1 [shape = 'u32[72,128]{1,0:T(1,128)}', space=vmem, size = 0x9000, scoped, tag = 'internal scratch']
  %s0 = inlined_call_operand.hbm [shape: f32[2,8,32], index: 0, kind: input, shape index: {}]
  %s1 = inlined_call_operand.hbm [shape: f32[2,8,32], index: 1, kind: input, shape index: {}]
  %s2 = inlined_call_operand.vmem [shape: f32[2,8,32], index: 2, kind: input, shape index: {}]
  %s3 = inlined_call_operand.vmem [shape: s32[2,8,8], index: 3, kind: input, shape index: {}]
  %s4 = inlined_call_operand.vmem [shape: s32[2,8,8], index: 4, kind: input, shape index: {}]
  %s5 = inlined_call_operand.vmem [shape: f32[32,96], index: 5, kind: input, shape index: {}]
  %s6 = inlined_call_operand.vmem [shape: f32[32,32], index: 6, kind: input, shape index: {}]
  %s7 = inlined_call_operand.vmem [shape: f32[1,32], index: 7, kind: input, shape index: {}]
  %s8 = inlined_call_operand.vmem [shape: f32[1,32], index: 8, kind: input, shape index: {}]
  %s9 = inlined_call_operand.vmem [shape: f32[1,32], index: 9, kind: input, shape index: {}]
  %s10 = inlined_call_operand.vmem [shape: f32[32,32], index: 10, kind: input, shape index: {}]
  %s11 = inlined_call_operand.hbm [shape: f32[32,32], index: 11, kind: input, shape index: {}]
  %s12 = inlined_call_operand.hbm [shape: f32[32,32], index: 12, kind: input, shape index: {}]
  %s13 = inlined_call_operand.hbm [shape: f32[32,32], index: 13, kind: input, shape index: {}]
  %s14 = inlined_call_operand.vmem [shape: f32[1,32], index: 14, kind: input, shape index: {}]
  %s15 = inlined_call_operand.vmem [shape: f32[1,32], index: 15, kind: input, shape index: {}]
  %s16 = inlined_call_operand.vmem [shape: f32[1,32], index: 16, kind: input, shape index: {}]
  %s17 = inlined_call_operand.hbm [shape: f32[32,64], index: 17, kind: input, shape index: {}]
  %s18 = inlined_call_operand.vmem [shape: f32[1,64], index: 18, kind: input, shape index: {}]
  %s19 = inlined_call_operand.vmem [shape: f32[64,32], index: 19, kind: input, shape index: {}]
  %s20 = inlined_call_operand.vmem [shape: f32[1,32], index: 20, kind: input, shape index: {}]
  %s21 = inlined_call_operand.hbm [shape: f32[1,32], index: 21, kind: input, shape index: {}]
  %s22 = inlined_call_operand.hbm [shape: f32[1,32], index: 22, kind: input, shape index: {}]
  %s23 = inlined_call_operand.hbm [shape: f32[2,8,32], index: 23, kind: output, shape index: {}]
  %s24 = sld [smem:[#allocation0]]
  $region157: #{decoder_block_forward.1} parent=0
    _
  %s26 = ssub.s32 1, %s24
  %s27 = scalar_select 0, %s26, %s24
  $region1: #{decoder_block_forward.1} parent=0
    #allocation2 [shape = 'u8[8192]{0}', space=vmem, size = 0x2000, scoped, tag = 'input window, operand 0']
    #allocation3 [shape = 's32[2]{0}', space=sflag, size = 0x8, scoped, tag = 'scoped memory for decoder_block_forward.1']
    #allocation4 [shape = 's32[2]{0}', space=sflag, size = 0x8, scoped, tag = 'scoped memory for decoder_block_forward.1']
    #allocation5 [shape = 'u8[8192]{0}', space=vmem, size = 0x2000, scoped, tag = 'input window, operand 1']
    #allocation6 [shape = 's32[2]{0}', space=sflag, size = 0x8, scoped, tag = 'scoped memory for decoder_block_forward.1']
    #allocation7 [shape = 'u8[16384]{0}', space=vmem, size = 0x4000, scoped, tag = 'input window, operand 11, single buffered']
    #allocation8 [shape = 'u8[16384]{0}', space=vmem, size = 0x4000, scoped, tag = 'input window, operand 12, single buffered']
    #allocation9 [shape = 's32[1]{0}', space=sflag, size = 0x4, scoped, tag = 'scoped memory for decoder_block_forward.1']
    #allocation10 [shape = 'u8[16384]{0}', space=vmem, size = 0x4000, scoped, tag = 'input window, operand 13, single buffered']
    #allocation11 [shape = 'u8[16384]{0}', space=vmem, size = 0x4000, scoped, tag = 'input window, operand 17, single buffered']
    #allocation12 [shape = 's32[1]{0}', space=sflag, size = 0x4, scoped, tag = 'scoped memory for decoder_block_forward.1']
    #allocation13 [shape = 'u8[512]{0}', space=vmem, size = 0x400, scoped, tag = 'input window, operand 21, single buffered']
    #allocation14 [shape = 'u8[512]{0}', space=vmem, size = 0x400, scoped, tag = 'input window, operand 22, single buffered']
    #allocation15 [shape = 's32[1]{0}', space=sflag, size = 0x4, scoped, tag = 'scoped memory for decoder_block_forward.1']
    #allocation16 [shape = 'u8[8192]{0}', space=vmem, size = 0x2000, scoped, tag = 'output window, operand 0']
    %28 = vsyncpa [#allocation3], 0
    %s29 = scalar_lea.sflag [#allocation3], 1
    %30 = vsyncpa %s29, 0
    %31 = vsyncpa [#allocation6], 0
    %s32 = scalar_lea.sflag [#allocation6], 1
    %33 = vsyncpa %s32, 0
    %34 = vsyncpa [#allocation9], 0
    %35 = vsyncpa [#allocation12], 0
    %36 = vsyncpa [#allocation15], 0
    %37 = vsyncpa [#allocation4], 0
    %s38 = scalar_lea.sflag [#allocation4], 1
    %39 = vsyncpa %s38, 0
    loop: start=0, step=1, limit=4
    $region2: #{decoder_block_forward.1} parent=1 // loop_pre_header
      _
    $region3: #{decoder_block_forward.1} parent=1 // loop_header
      %s41 = sphi 0, %s45
      %p42 = scmp.ge.s32.totalorder %s41, 4
      %s51 = sphi 0, %s53
      %s54 = sphi 0, %s51
      %s55 = sphi 0, %s54
      %s71 = sphi 0, %s55
      %s77 = sphi 0, %s79
      %s80 = sphi 0, %s77
      %s81 = sphi 0, %s80
      %s97 = sphi 0, %s81
      %s103 = sphi 0, %s105
      %s106 = sphi 0, %s103
      %s107 = sphi 0, %s106
      %s123 = sphi 0, %s107
      %s129 = sphi 0, %s131
      %s132 = sphi 0, %s129
      %s133 = sphi 0, %s132
      %s149 = sphi 0, %s133
      %s155 = sphi 0, %s157
      %s158 = sphi 0, %s155
      %s159 = sphi 0, %s158
      %s175 = sphi 0, %s159
      %s179 = sphi 0, %s179
      %s181 = sphi 0, %s179
      %s182 = sphi 0, %s181
      %s196 = sphi 0, %s182
      %s200 = sphi 0, %s200
      %s202 = sphi 0, %s200
      %s203 = sphi 0, %s202
      %s217 = sphi 0, %s203
      %s221 = sphi 0, %s221
      %s223 = sphi 0, %s221
      %s224 = sphi 0, %s223
      %s238 = sphi 0, %s224
      %s242 = sphi 0, %s242
      %s244 = sphi 0, %s242
      %s245 = sphi 0, %s244
      %s259 = sphi 0, %s245
      %s263 = sphi 0, %s263
      %s265 = sphi 0, %s263
      %s266 = sphi 0, %s265
      %s280 = sphi 0, %s266
      %s284 = sphi 0, %s284
      %s286 = sphi 0, %s284
      %s287 = sphi 0, %s286
      %s301 = sphi 0, %s287
      %s305 = sphi 0, %s305
      %s307 = sphi 0, %s305
      %s308 = sphi 0, %s307
      %s322 = sphi 0, %s308
      %s326 = sphi 0, %s326
      %s328 = sphi 0, %s326
      %s329 = sphi 0, %s328
      %s343 = sphi 0, %s329
      %s347 = sphi 0, %s347
      %s349 = sphi 0, %s347
      %s350 = sphi 0, %s349
      %s364 = sphi 0, %s350
      %s368 = sphi 0, %s368
      %s370 = sphi 0, %s368
      %s371 = sphi 0, %s370
      %s385 = sphi 0, %s371
      %s389 = sphi 0, %s389
      %s391 = sphi 0, %s389
      %s392 = sphi 0, %s391
      %s406 = sphi 0, %s392
      %s410 = sphi 0, %s410
      %s412 = sphi 0, %s410
      %s413 = sphi 0, %s412
      %s427 = sphi 0, %s413
      %s431 = sphi 0, %s431
      %s433 = sphi 0, %s431
      %s434 = sphi 0, %s433
      %s448 = sphi 0, %s434
      %s452 = sphi 0, %s452
      %s454 = sphi 0, %s452
      %s455 = sphi 0, %s454
      %s469 = sphi 0, %s455
      %s473 = sphi 0, %s473
      %s475 = sphi 0, %s473
      %s476 = sphi 0, %s475
      %s490 = sphi 0, %s476
      %s494 = sphi 0, %s494
      %s496 = sphi 0, %s494
      %s497 = sphi 0, %s496
      %s511 = sphi 0, %s497
      %s515 = sphi 0, %s515
      %s517 = sphi 0, %s515
      %s518 = sphi 0, %s517
      %s532 = sphi 0, %s518
      %s536 = sphi 0, %s536
      %s538 = sphi 0, %s536
      %s539 = sphi 0, %s538
      %s553 = sphi 0, %s539
      %s559 = sphi 0, %s561
      %s562 = sphi 0, %s559
      %s563 = sphi 0, %s562
      %s579 = sphi 0, %s563
    $region4: #{decoder_block_forward.1} parent=1 // loop_header_branch
      %44 = sbr.rel (%p42) target = $region8
    $region5: #{decoder_block_forward.1} parent=1 // loop_body
      %s46 = ssub.s32 %s41, 1
      %s47 = ssub.s32 %s41, 2
      %s48 = sadd.s32 %s41, 1
      %s49 = ssub.s32 %s41, %s48
      %p50 = scmp.eq.s32.totalorder %s49, 0
      %s52 = sadd.s32 %s51, 1
      %s53 = scalar_select %p50, %s51, %s52
      %p56 = pneg %p50
      %p57 = scmp.eq.s32.totalorder %s41, 1
      %p58 = por %p56, %p57
      %p59 = scmp.ne.s32.totalorder %s51, %s54
      %p60 = scmp.eq.s32.totalorder %s41, 0
      %p61 = por %p59, %p60
      %p62 = scmp.ne.s32.totalorder %s51, %s54
      %p63 = scmp.eq.s32.totalorder %s46, 1
      %p64 = por %p62, %p63
      %p65 = scmp.ne.s32.totalorder %s54, %s55
      %p66 = scmp.eq.s32.totalorder %s46, 0
      %p67 = por %p65, %p66
      %p68 = scmp.ne.s32.totalorder %s54, %s55
      %p69 = scmp.eq.s32.totalorder %s47, 1
      %p70 = por %p68, %p69
      %p72 = scmp.ne.s32.totalorder %s55, %s71
      %p73 = scmp.eq.s32.totalorder %s47, 0
      %p74 = por %p72, %p73
      %s75 = ssub.s32 %s41, %s48
      %p76 = scmp.eq.s32.totalorder %s75, 0
      %s78 = sadd.s32 %s77, 1
      %s79 = scalar_select %p76, %s77, %s78
      %p82 = pneg %p76
      %p83 = scmp.eq.s32.totalorder %s41, 1
      %p84 = por %p82, %p83
      %p85 = scmp.ne.s32.totalorder %s77, %s80
      %p86 = scmp.eq.s32.totalorder %s41, 0
      %p87 = por %p85, %p86
      %p88 = scmp.ne.s32.totalorder %s77, %s80
      %p89 = scmp.eq.s32.totalorder %s46, 1
      %p90 = por %p88, %p89
      %p91 = scmp.ne.s32.totalorder %s80, %s81
      %p92 = scmp.eq.s32.totalorder %s46, 0
      %p93 = por %p91, %p92
      %p94 = scmp.ne.s32.totalorder %s80, %s81
      %p95 = scmp.eq.s32.totalorder %s47, 1
      %p96 = por %p94, %p95
      %p98 = scmp.ne.s32.totalorder %s81, %s97
      %p99 = scmp.eq.s32.totalorder %s47, 0
      %p100 = por %p98, %p99
      %s101 = ssub.s32 %s41, %s48
      %p102 = scmp.eq.s32.totalorder %s101, 0
      %s104 = sadd.s32 %s103, 1
      %s105 = scalar_select %p102, %s103, %s104
      %p108 = pneg %p102
      %p109 = scmp.eq.s32.totalorder %s41, 1
      %p110 = por %p108, %p109
      %p111 = scmp.ne.s32.totalorder %s103, %s106
      %p112 = scmp.eq.s32.totalorder %s41, 0
      %p113 = por %p111, %p112
      %p114 = scmp.ne.s32.totalorder %s103, %s106
      %p115 = scmp.eq.s32.totalorder %s46, 1
      %p116 = por %p114, %p115
      %p117 = scmp.ne.s32.totalorder %s106, %s107
      %p118 = scmp.eq.s32.totalorder %s46, 0
      %p119 = por %p117, %p118
      %p120 = scmp.ne.s32.totalorder %s106, %s107
      %p121 = scmp.eq.s32.totalorder %s47, 1
      %p122 = por %p120, %p121
      %p124 = scmp.ne.s32.totalorder %s107, %s123
      %p125 = scmp.eq.s32.totalorder %s47, 0
      %p126 = por %p124, %p125
      %s127 = ssub.s32 %s41, %s48
      %p128 = scmp.eq.s32.totalorder %s127, 0
      %s130 = sadd.s32 %s129, 1
      %s131 = scalar_select %p128, %s129, %s130
      %p134 = pneg %p128
      %p135 = scmp.eq.s32.totalorder %s41, 1
      %p136 = por %p134, %p135
      %p137 = scmp.ne.s32.totalorder %s129, %s132
      %p138 = scmp.eq.s32.totalorder %s41, 0
      %p139 = por %p137, %p138
      %p140 = scmp.ne.s32.totalorder %s129, %s132
      %p141 = scmp.eq.s32.totalorder %s46, 1
      %p142 = por %p140, %p141
      %p143 = scmp.ne.s32.totalorder %s132, %s133
      %p144 = scmp.eq.s32.totalorder %s46, 0
      %p145 = por %p143, %p144
      %p146 = scmp.ne.s32.totalorder %s132, %s133
      %p147 = scmp.eq.s32.totalorder %s47, 1
      %p148 = por %p146, %p147
      %p150 = scmp.ne.s32.totalorder %s133, %s149
      %p151 = scmp.eq.s32.totalorder %s47, 0
      %p152 = por %p150, %p151
      %s153 = ssub.s32 %s41, %s48
      %p154 = scmp.eq.s32.totalorder %s153, 0
      %s156 = sadd.s32 %s155, 1
      %s157 = scalar_select %p154, %s155, %s156
      %p160 = pneg %p154
      %p161 = scmp.eq.s32.totalorder %s41, 1
      %p162 = por %p160, %p161
      %p163 = scmp.ne.s32.totalorder %s155, %s158
      %p164 = scmp.eq.s32.totalorder %s41, 0
      %p165 = por %p163, %p164
      %p166 = scmp.ne.s32.totalorder %s155, %s158
      %p167 = scmp.eq.s32.totalorder %s46, 1
      %p168 = por %p166, %p167
      %p169 = scmp.ne.s32.totalorder %s158, %s159
      %p170 = scmp.eq.s32.totalorder %s46, 0
      %p171 = por %p169, %p170
      %p172 = scmp.ne.s32.totalorder %s158, %s159
      %p173 = scmp.eq.s32.totalorder %s47, 1
      %p174 = por %p172, %p173
      %p176 = scmp.ne.s32.totalorder %s159, %s175
      %p177 = scmp.eq.s32.totalorder %s47, 0
      %p178 = por %p176, %p177
      %s180 = sadd.s32 %s179, 1
      %p183 = scmp.eq.s32.totalorder %s41, 1
      %p184 = scmp.ne.s32.totalorder %s179, %s181
      %p185 = scmp.eq.s32.totalorder %s41, 0
      %p186 = por %p184, %p185
      %p187 = scmp.ne.s32.totalorder %s179, %s181
      %p188 = scmp.eq.s32.totalorder %s46, 1
      %p189 = por %p187, %p188
      %p190 = scmp.ne.s32.totalorder %s181, %s182
      %p191 = scmp.eq.s32.totalorder %s46, 0
      %p192 = por %p190, %p191
      %p193 = scmp.ne.s32.totalorder %s181, %s182
      %p194 = scmp.eq.s32.totalorder %s47, 1
      %p195 = por %p193, %p194
      %p197 = scmp.ne.s32.totalorder %s182, %s196
      %p198 = scmp.eq.s32.totalorder %s47, 0
      %p199 = por %p197, %p198
      %s201 = sadd.s32 %s200, 1
      %p204 = scmp.eq.s32.totalorder %s41, 1
      %p205 = scmp.ne.s32.totalorder %s200, %s202
      %p206 = scmp.eq.s32.totalorder %s41, 0
      %p207 = por %p205, %p206
      %p208 = scmp.ne.s32.totalorder %s200, %s202
      %p209 = scmp.eq.s32.totalorder %s46, 1
      %p210 = por %p208, %p209
      %p211 = scmp.ne.s32.totalorder %s202, %s203
      %p212 = scmp.eq.s32.totalorder %s46, 0
      %p213 = por %p211, %p212
      %p214 = scmp.ne.s32.totalorder %s202, %s203
      %p215 = scmp.eq.s32.totalorder %s47, 1
      %p216 = por %p214, %p215
      %p218 = scmp.ne.s32.totalorder %s203, %s217
      %p219 = scmp.eq.s32.totalorder %s47, 0
      %p220 = por %p218, %p219
      %s222 = sadd.s32 %s221, 1
      %p225 = scmp.eq.s32.totalorder %s41, 1
      %p226 = scmp.ne.s32.totalorder %s221, %s223
      %p227 = scmp.eq.s32.totalorder %s41, 0
      %p228 = por %p226, %p227
      %p229 = scmp.ne.s32.totalorder %s221, %s223
      %p230 = scmp.eq.s32.totalorder %s46, 1
      %p231 = por %p229, %p230
      %p232 = scmp.ne.s32.totalorder %s223, %s224
      %p233 = scmp.eq.s32.totalorder %s46, 0
      %p234 = por %p232, %p233
      %p235 = scmp.ne.s32.totalorder %s223, %s224
      %p236 = scmp.eq.s32.totalorder %s47, 1
      %p237 = por %p235, %p236
      %p239 = scmp.ne.s32.totalorder %s224, %s238
      %p240 = scmp.eq.s32.totalorder %s47, 0
      %p241 = por %p239, %p240
      %s243 = sadd.s32 %s242, 1
      %p246 = scmp.eq.s32.totalorder %s41, 1
      %p247 = scmp.ne.s32.totalorder %s242, %s244
      %p248 = scmp.eq.s32.totalorder %s41, 0
      %p249 = por %p247, %p248
      %p250 = scmp.ne.s32.totalorder %s242, %s244
      %p251 = scmp.eq.s32.totalorder %s46, 1
      %p252 = por %p250, %p251
      %p253 = scmp.ne.s32.totalorder %s244, %s245
      %p254 = scmp.eq.s32.totalorder %s46, 0
      %p255 = por %p253, %p254
      %p256 = scmp.ne.s32.totalorder %s244, %s245
      %p257 = scmp.eq.s32.totalorder %s47, 1
      %p258 = por %p256, %p257
      %p260 = scmp.ne.s32.totalorder %s245, %s259
      %p261 = scmp.eq.s32.totalorder %s47, 0
      %p262 = por %p260, %p261
      %s264 = sadd.s32 %s263, 1
      %p267 = scmp.eq.s32.totalorder %s41, 1
      %p268 = scmp.ne.s32.totalorder %s263, %s265
      %p269 = scmp.eq.s32.totalorder %s41, 0
      %p270 = por %p268, %p269
      %p271 = scmp.ne.s32.totalorder %s263, %s265
      %p272 = scmp.eq.s32.totalorder %s46, 1
      %p273 = por %p271, %p272
      %p274 = scmp.ne.s32.totalorder %s265, %s266
      %p275 = scmp.eq.s32.totalorder %s46, 0
      %p276 = por %p274, %p275
      %p277 = scmp.ne.s32.totalorder %s265, %s266
      %p278 = scmp.eq.s32.totalorder %s47, 1
      %p279 = por %p277, %p278
      %p281 = scmp.ne.s32.totalorder %s266, %s280
      %p282 = scmp.eq.s32.totalorder %s47, 0
      %p283 = por %p281, %p282
      %s285 = sadd.s32 %s284, 1
      %p288 = scmp.eq.s32.totalorder %s41, 1
      %p289 = scmp.ne.s32.totalorder %s284, %s286
      %p290 = scmp.eq.s32.totalorder %s41, 0
      %p291 = por %p289, %p290
      %p292 = scmp.ne.s32.totalorder %s284, %s286
      %p293 = scmp.eq.s32.totalorder %s46, 1
      %p294 = por %p292, %p293
      %p295 = scmp.ne.s32.totalorder %s286, %s287
      %p296 = scmp.eq.s32.totalorder %s46, 0
      %p297 = por %p295, %p296
      %p298 = scmp.ne.s32.totalorder %s286, %s287
      %p299 = scmp.eq.s32.totalorder %s47, 1
      %p300 = por %p298, %p299
      %p302 = scmp.ne.s32.totalorder %s287, %s301
      %p303 = scmp.eq.s32.totalorder %s47, 0
      %p304 = por %p302, %p303
      %s306 = sadd.s32 %s305, 1
      %p309 = scmp.eq.s32.totalorder %s41, 1
      %p310 = scmp.ne.s32.totalorder %s305, %s307
      %p311 = scmp.eq.s32.totalorder %s41, 0
      %p312 = por %p310, %p311
      %p313 = scmp.ne.s32.totalorder %s305, %s307
      %p314 = scmp.eq.s32.totalorder %s46, 1
      %p315 = por %p313, %p314
      %p316 = scmp.ne.s32.totalorder %s307, %s308
      %p317 = scmp.eq.s32.totalorder %s46, 0
      %p318 = por %p316, %p317
      %p319 = scmp.ne.s32.totalorder %s307, %s308
      %p320 = scmp.eq.s32.totalorder %s47, 1
      %p321 = por %p319, %p320
      %p323 = scmp.ne.s32.totalorder %s308, %s322
      %p324 = scmp.eq.s32.totalorder %s47, 0
      %p325 = por %p323, %p324
      %s327 = sadd.s32 %s326, 1
      %p330 = scmp.eq.s32.totalorder %s41, 1
      %p331 = scmp.ne.s32.totalorder %s326, %s328
      %p332 = scmp.eq.s32.totalorder %s41, 0
      %p333 = por %p331, %p332
      %p334 = scmp.ne.s32.totalorder %s326, %s328
      %p335 = scmp.eq.s32.totalorder %s46, 1
      %p336 = por %p334, %p335
      %p337 = scmp.ne.s32.totalorder %s328, %s329
      %p338 = scmp.eq.s32.totalorder %s46, 0
      %p339 = por %p337, %p338
      %p340 = scmp.ne.s32.totalorder %s328, %s329
      %p341 = scmp.eq.s32.totalorder %s47, 1
      %p342 = por %p340, %p341
      %p344 = scmp.ne.s32.totalorder %s329, %s343
      %p345 = scmp.eq.s32.totalorder %s47, 0
      %p346 = por %p344, %p345
      %s348 = sadd.s32 %s347, 1
      %p351 = scmp.eq.s32.totalorder %s41, 1
      %p352 = scmp.ne.s32.totalorder %s347, %s349
      %p353 = scmp.eq.s32.totalorder %s41, 0
      %p354 = por %p352, %p353
      %p355 = scmp.ne.s32.totalorder %s347, %s349
      %p356 = scmp.eq.s32.totalorder %s46, 1
      %p357 = por %p355, %p356
      %p358 = scmp.ne.s32.totalorder %s349, %s350
      %p359 = scmp.eq.s32.totalorder %s46, 0
      %p360 = por %p358, %p359
      %p361 = scmp.ne.s32.totalorder %s349, %s350
      %p362 = scmp.eq.s32.totalorder %s47, 1
      %p363 = por %p361, %p362
      %p365 = scmp.ne.s32.totalorder %s350, %s364
      %p366 = scmp.eq.s32.totalorder %s47, 0
      %p367 = por %p365, %p366
      %s369 = sadd.s32 %s368, 1
      %p372 = scmp.eq.s32.totalorder %s41, 1
      %p373 = scmp.ne.s32.totalorder %s368, %s370
      %p374 = scmp.eq.s32.totalorder %s41, 0
      %p375 = por %p373, %p374
      %p376 = scmp.ne.s32.totalorder %s368, %s370
      %p377 = scmp.eq.s32.totalorder %s46, 1
      %p378 = por %p376, %p377
      %p379 = scmp.ne.s32.totalorder %s370, %s371
      %p380 = scmp.eq.s32.totalorder %s46, 0
      %p381 = por %p379, %p380
      %p382 = scmp.ne.s32.totalorder %s370, %s371
      %p383 = scmp.eq.s32.totalorder %s47, 1
      %p384 = por %p382, %p383
      %p386 = scmp.ne.s32.totalorder %s371, %s385
      %p387 = scmp.eq.s32.totalorder %s47, 0
      %p388 = por %p386, %p387
      %s390 = sadd.s32 %s389, 1
      %p393 = scmp.eq.s32.totalorder %s41, 1
      %p394 = scmp.ne.s32.totalorder %s389, %s391
      %p395 = scmp.eq.s32.totalorder %s41, 0
      %p396 = por %p394, %p395
      %p397 = scmp.ne.s32.totalorder %s389, %s391
      %p398 = scmp.eq.s32.totalorder %s46, 1
      %p399 = por %p397, %p398
      %p400 = scmp.ne.s32.totalorder %s391, %s392
      %p401 = scmp.eq.s32.totalorder %s46, 0
      %p402 = por %p400, %p401
      %p403 = scmp.ne.s32.totalorder %s391, %s392
      %p404 = scmp.eq.s32.totalorder %s47, 1
      %p405 = por %p403, %p404
      %p407 = scmp.ne.s32.totalorder %s392, %s406
      %p408 = scmp.eq.s32.totalorder %s47, 0
      %p409 = por %p407, %p408
      %s411 = sadd.s32 %s410, 1
      %p414 = scmp.eq.s32.totalorder %s41, 1
      %p415 = scmp.ne.s32.totalorder %s410, %s412
      %p416 = scmp.eq.s32.totalorder %s41, 0
      %p417 = por %p415, %p416
      %p418 = scmp.ne.s32.totalorder %s410, %s412
      %p419 = scmp.eq.s32.totalorder %s46, 1
      %p420 = por %p418, %p419
      %p421 = scmp.ne.s32.totalorder %s412, %s413
      %p422 = scmp.eq.s32.totalorder %s46, 0
      %p423 = por %p421, %p422
      %p424 = scmp.ne.s32.totalorder %s412, %s413
      %p425 = scmp.eq.s32.totalorder %s47, 1
      %p426 = por %p424, %p425
      %p428 = scmp.ne.s32.totalorder %s413, %s427
      %p429 = scmp.eq.s32.totalorder %s47, 0
      %p430 = por %p428, %p429
      %s432 = sadd.s32 %s431, 1
      %p435 = scmp.eq.s32.totalorder %s41, 1
      %p436 = scmp.ne.s32.totalorder %s431, %s433
      %p437 = scmp.eq.s32.totalorder %s41, 0
      %p438 = por %p436, %p437
      %p439 = scmp.ne.s32.totalorder %s431, %s433
      %p440 = scmp.eq.s32.totalorder %s46, 1
      %p441 = por %p439, %p440
      %p442 = scmp.ne.s32.totalorder %s433, %s434
      %p443 = scmp.eq.s32.totalorder %s46, 0
      %p444 = por %p442, %p443
      %p445 = scmp.ne.s32.totalorder %s433, %s434
      %p446 = scmp.eq.s32.totalorder %s47, 1
      %p447 = por %p445, %p446
      %p449 = scmp.ne.s32.totalorder %s434, %s448
      %p450 = scmp.eq.s32.totalorder %s47, 0
      %p451 = por %p449, %p450
      %s453 = sadd.s32 %s452, 1
      %p456 = scmp.eq.s32.totalorder %s41, 1
      %p457 = scmp.ne.s32.totalorder %s452, %s454
      %p458 = scmp.eq.s32.totalorder %s41, 0
      %p459 = por %p457, %p458
      %p460 = scmp.ne.s32.totalorder %s452, %s454
      %p461 = scmp.eq.s32.totalorder %s46, 1
      %p462 = por %p460, %p461
      %p463 = scmp.ne.s32.totalorder %s454, %s455
      %p464 = scmp.eq.s32.totalorder %s46, 0
      %p465 = por %p463, %p464
      %p466 = scmp.ne.s32.totalorder %s454, %s455
      %p467 = scmp.eq.s32.totalorder %s47, 1
      %p468 = por %p466, %p467
      %p470 = scmp.ne.s32.totalorder %s455, %s469
      %p471 = scmp.eq.s32.totalorder %s47, 0
      %p472 = por %p470, %p471
      %s474 = sadd.s32 %s473, 1
      %p477 = scmp.eq.s32.totalorder %s41, 1
      %p478 = scmp.ne.s32.totalorder %s473, %s475
      %p479 = scmp.eq.s32.totalorder %s41, 0
      %p480 = por %p478, %p479
      %p481 = scmp.ne.s32.totalorder %s473, %s475
      %p482 = scmp.eq.s32.totalorder %s46, 1
      %p483 = por %p481, %p482
      %p484 = scmp.ne.s32.totalorder %s475, %s476
      %p485 = scmp.eq.s32.totalorder %s46, 0
      %p486 = por %p484, %p485
      %p487 = scmp.ne.s32.totalorder %s475, %s476
      %p488 = scmp.eq.s32.totalorder %s47, 1
      %p489 = por %p487, %p488
      %p491 = scmp.ne.s32.totalorder %s476, %s490
      %p492 = scmp.eq.s32.totalorder %s47, 0
      %p493 = por %p491, %p492
      %s495 = sadd.s32 %s494, 1
      %p498 = scmp.eq.s32.totalorder %s41, 1
      %p499 = scmp.ne.s32.totalorder %s494, %s496
      %p500 = scmp.eq.s32.totalorder %s41, 0
      %p501 = por %p499, %p500
      %p502 = scmp.ne.s32.totalorder %s494, %s496
      %p503 = scmp.eq.s32.totalorder %s46, 1
      %p504 = por %p502, %p503
      %p505 = scmp.ne.s32.totalorder %s496, %s497
      %p506 = scmp.eq.s32.totalorder %s46, 0
      %p507 = por %p505, %p506
      %p508 = scmp.ne.s32.totalorder %s496, %s497
      %p509 = scmp.eq.s32.totalorder %s47, 1
      %p510 = por %p508, %p509
      %p512 = scmp.ne.s32.totalorder %s497, %s511
      %p513 = scmp.eq.s32.totalorder %s47, 0
      %p514 = por %p512, %p513
      %s516 = sadd.s32 %s515, 1
      %p519 = scmp.eq.s32.totalorder %s41, 1
      %p520 = scmp.ne.s32.totalorder %s515, %s517
      %p521 = scmp.eq.s32.totalorder %s41, 0
      %p522 = por %p520, %p521
      %p523 = scmp.ne.s32.totalorder %s515, %s517
      %p524 = scmp.eq.s32.totalorder %s46, 1
      %p525 = por %p523, %p524
      %p526 = scmp.ne.s32.totalorder %s517, %s518
      %p527 = scmp.eq.s32.totalorder %s46, 0
      %p528 = por %p526, %p527
      %p529 = scmp.ne.s32.totalorder %s517, %s518
      %p530 = scmp.eq.s32.totalorder %s47, 1
      %p531 = por %p529, %p530
      %p533 = scmp.ne.s32.totalorder %s518, %s532
      %p534 = scmp.eq.s32.totalorder %s47, 0
      %p535 = por %p533, %p534
      %s537 = sadd.s32 %s536, 1
      %p540 = scmp.eq.s32.totalorder %s41, 1
      %p541 = scmp.ne.s32.totalorder %s536, %s538
      %p542 = scmp.eq.s32.totalorder %s41, 0
      %p543 = por %p541, %p542
      %p544 = scmp.ne.s32.totalorder %s536, %s538
      %p545 = scmp.eq.s32.totalorder %s46, 1
      %p546 = por %p544, %p545
      %p547 = scmp.ne.s32.totalorder %s538, %s539
      %p548 = scmp.eq.s32.totalorder %s46, 0
      %p549 = por %p547, %p548
      %p550 = scmp.ne.s32.totalorder %s538, %s539
      %p551 = scmp.eq.s32.totalorder %s47, 1
      %p552 = por %p550, %p551
      %p554 = scmp.ne.s32.totalorder %s539, %s553
      %p555 = scmp.eq.s32.totalorder %s47, 0
      %p556 = por %p554, %p555
      %s557 = ssub.s32 %s41, %s48
      %p558 = scmp.eq.s32.totalorder %s557, 0
      %s560 = sadd.s32 %s559, 1
      %s561 = scalar_select %p558, %s559, %s560
      %p564 = pneg %p558
      %p565 = scmp.eq.s32.totalorder %s41, 1
      %p566 = por %p564, %p565
      %p567 = scmp.ne.s32.totalorder %s559, %s562
      %p568 = scmp.eq.s32.totalorder %s41, 0
      %p569 = por %p567, %p568
      %p570 = scmp.ne.s32.totalorder %s559, %s562
      %p571 = scmp.eq.s32.totalorder %s46, 1
      %p572 = por %p570, %p571
      %p573 = scmp.ne.s32.totalorder %s562, %s563
      %p574 = scmp.eq.s32.totalorder %s46, 0
      %p575 = por %p573, %p574
      %p576 = scmp.ne.s32.totalorder %s562, %s563
      %p577 = scmp.eq.s32.totalorder %s47, 1
      %p578 = por %p576, %p577
      %p580 = scmp.ne.s32.totalorder %s563, %s579
      %p581 = scmp.eq.s32.totalorder %s47, 0
      %p582 = por %p580, %p581
      %p583 = scmp.le.s32.totalorder 1, %s41
      %p584 = scmp.lt.s32.totalorder %s41, 3
      %p585 = pnand %p583, %p584
      %p586 = pneg %p585
      // Predicated region
      $region9: #{decoder_block_forward.1} parent=5 // pred_check
        _
      $region10: #{decoder_block_forward.1} parent=5 // pred_check_branch
        %588 = sbr.rel (%p585) target = $region12
      $region11: #{decoder_block_forward.1} parent=5 // pred_region
        %s589 = ssub.s32 %s41, 1
        // Predicated region
        $region13: #{decoder_block_forward.1} parent=11 // pred_check
          %p590 = pneg %p192
        $region14: #{decoder_block_forward.1} parent=11 // pred_check_branch
          %592 = sbr.rel (%p590) target = $region16
        $region15: #{decoder_block_forward.1} parent=11 // pred_region
          _
        $region16: #{decoder_block_forward.1} parent=11 // pred_fallthru
          _
        // Predicated region
        $region17: #{decoder_block_forward.1} parent=11 // pred_check
          %p593 = pneg %p213
        $region18: #{decoder_block_forward.1} parent=11 // pred_check_branch
          %595 = sbr.rel (%p593) target = $region20
        $region19: #{decoder_block_forward.1} parent=11 // pred_region
          _
        $region20: #{decoder_block_forward.1} parent=11 // pred_fallthru
          _
        // Predicated region
        $region21: #{decoder_block_forward.1} parent=11 // pred_check
          %p596 = pneg %p234
        $region22: #{decoder_block_forward.1} parent=11 // pred_check_branch
          %598 = sbr.rel (%p596) target = $region24
        $region23: #{decoder_block_forward.1} parent=11 // pred_region
          _
        $region24: #{decoder_block_forward.1} parent=11 // pred_fallthru
          _
        // Predicated region
        $region25: #{decoder_block_forward.1} parent=11 // pred_check
          %p599 = pneg %p255
        $region26: #{decoder_block_forward.1} parent=11 // pred_check_branch
          %601 = sbr.rel (%p599) target = $region28
        $region27: #{decoder_block_forward.1} parent=11 // pred_region
          _
        $region28: #{decoder_block_forward.1} parent=11 // pred_fallthru
          _
        // Predicated region
        $region29: #{decoder_block_forward.1} parent=11 // pred_check
          %p602 = pneg %p276
        $region30: #{decoder_block_forward.1} parent=11 // pred_check_branch
          %604 = sbr.rel (%p602) target = $region32
        $region31: #{decoder_block_forward.1} parent=11 // pred_region
          _
        $region32: #{decoder_block_forward.1} parent=11 // pred_fallthru
          _
        // Predicated region
        $region33: #{decoder_block_forward.1} parent=11 // pred_check
          %p605 = pneg %p297
        $region34: #{decoder_block_forward.1} parent=11 // pred_check_branch
          %607 = sbr.rel (%p605) target = $region36
        $region35: #{decoder_block_forward.1} parent=11 // pred_region
          _
        $region36: #{decoder_block_forward.1} parent=11 // pred_fallthru
          _
        // Predicated region
        $region37: #{decoder_block_forward.1} parent=11 // pred_check
          %p608 = pneg %p318
        $region38: #{decoder_block_forward.1} parent=11 // pred_check_branch
          %610 = sbr.rel (%p608) target = $region40
        $region39: #{decoder_block_forward.1} parent=11 // pred_region
          %612 = vsyncadd [#allocation6], 0
          %s613 = sshll.u32 %s11, 4
          %s614 = int_to_ptr.hbm [resolvable:$true] %s613
          %s615 = sshll.u32 [#allocation7], 4
          %s616 = int_to_ptr.vmem [resolvable:$true] %s615
          %621 = dma.hbm_to_vmem [thread:$0]  %s614, 512, %s616, [#allocation6], 128, 128, 8
        $region40: #{decoder_block_forward.1} parent=11 // pred_fallthru
          _
        // Predicated region
        $region41: #{decoder_block_forward.1} parent=11 // pred_check
          %p622 = pneg %p339
        $region42: #{decoder_block_forward.1} parent=11 // pred_check_branch
          %624 = sbr.rel (%p622) target = $region44
        $region43: #{decoder_block_forward.1} parent=11 // pred_region
          %626 = vsyncadd [#allocation9], 0
          %s627 = sshll.u32 %s12, 4
          %s628 = int_to_ptr.hbm [resolvable:$true] %s627
          %s629 = sshll.u32 [#allocation8], 4
          %s630 = int_to_ptr.vmem [resolvable:$true] %s629
          %635 = dma.hbm_to_vmem [thread:$0]  %s628, 512, %s630, [#allocation9], 128, 128, 8
        $region44: #{decoder_block_forward.1} parent=11 // pred_fallthru
          _
        // Predicated region
        $region45: #{decoder_block_forward.1} parent=11 // pred_check
          %p636 = pneg %p360
        $region46: #{decoder_block_forward.1} parent=11 // pred_check_branch
          %638 = sbr.rel (%p636) target = $region48
        $region47: #{decoder_block_forward.1} parent=11 // pred_region
          %640 = vsyncadd [#allocation9], 0
          %s641 = sshll.u32 %s13, 4
          %s642 = int_to_ptr.hbm [resolvable:$true] %s641
          %s643 = sshll.u32 [#allocation10], 4
          %s644 = int_to_ptr.vmem [resolvable:$true] %s643
          %649 = dma.hbm_to_vmem [thread:$0]  %s642, 512, %s644, [#allocation9], 128, 128, 8
        $region48: #{decoder_block_forward.1} parent=11 // pred_fallthru
          _
        // Predicated region
        $region49: #{decoder_block_forward.1} parent=11 // pred_check
          %p650 = pneg %p381
        $region50: #{decoder_block_forward.1} parent=11 // pred_check_branch
          %652 = sbr.rel (%p650) target = $region52
        $region51: #{decoder_block_forward.1} parent=11 // pred_region
          _
        $region52: #{decoder_block_forward.1} parent=11 // pred_fallthru
          _
        // Predicated region
        $region53: #{decoder_block_forward.1} parent=11 // pred_check
          %p653 = pneg %p402
        $region54: #{decoder_block_forward.1} parent=11 // pred_check_branch
          %655 = sbr.rel (%p653) target = $region56
        $region55: #{decoder_block_forward.1} parent=11 // pred_region
          _
        $region56: #{decoder_block_forward.1} parent=11 // pred_fallthru
          _
        // Predicated region
        $region57: #{decoder_block_forward.1} parent=11 // pred_check
          %p656 = pneg %p423
        $region58: #{decoder_block_forward.1} parent=11 // pred_check_branch
          %658 = sbr.rel (%p656) target = $region60
        $region59: #{decoder_block_forward.1} parent=11 // pred_region
          _
        $region60: #{decoder_block_forward.1} parent=11 // pred_fallthru
          _
        // Predicated region
        $region61: #{decoder_block_forward.1} parent=11 // pred_check
          %p659 = pneg %p444
        $region62: #{decoder_block_forward.1} parent=11 // pred_check_branch
          %661 = sbr.rel (%p659) target = $region64
        $region63: #{decoder_block_forward.1} parent=11 // pred_region
          %663 = vsyncadd [#allocation12], 0
          %s664 = sshll.u32 %s17, 4
          %s665 = int_to_ptr.hbm [resolvable:$true] %s664
          %s666 = sshll.u32 [#allocation11], 4
          %s667 = int_to_ptr.vmem [resolvable:$true] %s666
          %672 = dma.hbm_to_vmem [thread:$0]  %s665, 512, %s667, [#allocation12], 128, 128, 8
        $region64: #{decoder_block_forward.1} parent=11 // pred_fallthru
          _
        // Predicated region
        $region65: #{decoder_block_forward.1} parent=11 // pred_check
          %p673 = pneg %p465
        $region66: #{decoder_block_forward.1} parent=11 // pred_check_branch
          %675 = sbr.rel (%p673) target = $region68
        $region67: #{decoder_block_forward.1} parent=11 // pred_region
          _
        $region68: #{decoder_block_forward.1} parent=11 // pred_fallthru
          _
        // Predicated region
        $region69: #{decoder_block_forward.1} parent=11 // pred_check
          %p676 = pneg %p486
        $region70: #{decoder_block_forward.1} parent=11 // pred_check_branch
          %678 = sbr.rel (%p676) target = $region72
        $region71: #{decoder_block_forward.1} parent=11 // pred_region
          _
        $region72: #{decoder_block_forward.1} parent=11 // pred_fallthru
          _
        // Predicated region
        $region73: #{decoder_block_forward.1} parent=11 // pred_check
          %p679 = pneg %p507
        $region74: #{decoder_block_forward.1} parent=11 // pred_check_branch
          %681 = sbr.rel (%p679) target = $region76
        $region75: #{decoder_block_forward.1} parent=11 // pred_region
          _
        $region76: #{decoder_block_forward.1} parent=11 // pred_fallthru
          _
        // Predicated region
        $region77: #{decoder_block_forward.1} parent=11 // pred_check
          %p682 = pneg %p528
        $region78: #{decoder_block_forward.1} parent=11 // pred_check_branch
          %684 = sbr.rel (%p682) target = $region80
        $region79: #{decoder_block_forward.1} parent=11 // pred_region
          %686 = vsyncadd [#allocation12], 0
          %s688 = sshll.u32 %s21, 4
          %s689 = int_to_ptr.hbm [resolvable:$true] %s688
          %s690 = sshll.u32 [#allocation13], 4
          %s691 = int_to_ptr.vmem [resolvable:$true] %s690
          %693 = dma.hbm_to_vmem [thread:$0]  %s689, 16, %s691, [#allocation12]
        $region80: #{decoder_block_forward.1} parent=11 // pred_fallthru
          _
        // Predicated region
        $region81: #{decoder_block_forward.1} parent=11 // pred_check
          %p694 = pneg %p549
        $region82: #{decoder_block_forward.1} parent=11 // pred_check_branch
          %696 = sbr.rel (%p694) target = $region84
        $region83: #{decoder_block_forward.1} parent=11 // pred_region
          %698 = vsyncadd [#allocation15], 0
          %s700 = sshll.u32 %s22, 4
          %s701 = int_to_ptr.hbm [resolvable:$true] %s700
          %s702 = sshll.u32 [#allocation14], 4
          %s703 = int_to_ptr.vmem [resolvable:$true] %s702
          %705 = dma.hbm_to_vmem [thread:$0]  %s701, 16, %s703, [#allocation15]
        $region84: #{decoder_block_forward.1} parent=11 // pred_fallthru
          _
      $region12: #{decoder_block_forward.1} parent=5 // pred_fallthru
        _
      %p706 = scmp.lt.s32.totalorder %s41, 2
      // Predicated region
      $region85: #{decoder_block_forward.1} parent=5 // pred_check
        %p707 = pneg %p706
      $region86: #{decoder_block_forward.1} parent=5 // pred_check_branch
        %709 = sbr.rel (%p707) target = $region88
      $region87: #{decoder_block_forward.1} parent=5 // pred_region
        // Predicated region
        $region89: #{decoder_block_forward.1} parent=87 // pred_check
          %p710 = pneg %p61
        $region90: #{decoder_block_forward.1} parent=87 // pred_check_branch
          %712 = sbr.rel (%p710) target = $region92
        $region91: #{decoder_block_forward.1} parent=87 // pred_region
          %s713 = sand.u32 %s51, 1
          %s714 = scalar_lea.sflag [#allocation3], %s713
          %s715 = sand.u32 %s51, 1
          %s716 = smul.addr %s715, 8
          %s717 = scalar_lea.vmem [#allocation2], %s716
          %719 = vsyncadd %s714, 0
          %s720 = smul.addr %s41, 8
          %s721 = scalar_lea.hbm %s0, %s720
          %s723 = sshll.u32 %s721, 4
          %s724 = int_to_ptr.hbm [resolvable:$true] %s723
          %s725 = sshll.u32 %s717, 4
          %s726 = int_to_ptr.vmem [resolvable:$true] %s725
          %728 = dma.hbm_to_vmem [thread:$0]  %s724, 128, %s726, %s714
        $region92: #{decoder_block_forward.1} parent=87 // pred_fallthru
          _
        // Predicated region
        $region93: #{decoder_block_forward.1} parent=87 // pred_check
          %p729 = pneg %p87
        $region94: #{decoder_block_forward.1} parent=87 // pred_check_branch
          %731 = sbr.rel (%p729) target = $region96
        $region95: #{decoder_block_forward.1} parent=87 // pred_region
          %s732 = sand.u32 %s41, 1
          %s733 = scalar_lea.sflag [#allocation6], %s732
          %s734 = sand.u32 %s77, 1
          %s735 = smul.addr %s734, 8
          %s736 = scalar_lea.vmem [#allocation5], %s735
          %738 = vsyncadd %s733, 0
          %s739 = smul.addr %s41, 8
          %s740 = scalar_lea.hbm %s1, %s739
          %s742 = sshll.u32 %s740, 4
          %s743 = int_to_ptr.hbm [resolvable:$true] %s742
          %s744 = sshll.u32 %s736, 4
          %s745 = int_to_ptr.vmem [resolvable:$true] %s744
          %747 = dma.hbm_to_vmem [thread:$0]  %s743, 128, %s745, %s733
        $region96: #{decoder_block_forward.1} parent=87 // pred_fallthru
          _
        // Predicated region
        $region97: #{decoder_block_forward.1} parent=87 // pred_check
          %p748 = pneg %p113
        $region98: #{decoder_block_forward.1} parent=87 // pred_check_branch
          %750 = sbr.rel (%p748) target = $region100
        $region99: #{decoder_block_forward.1} parent=87 // pred_region
          %p751 = scmp.lt.s32.totalorder %s41, 1
          %s752 = scalar_select %p751, %s41, 1
          %s753 = smul.addr %s752, 8
          %s754 = scalar_lea.vmem %s2, %s753
        $region100: #{decoder_block_forward.1} parent=87 // pred_fallthru
          _
        // Predicated region
        $region101: #{decoder_block_forward.1} parent=87 // pred_check
          %p755 = pneg %p139
        $region102: #{decoder_block_forward.1} parent=87 // pred_check_branch
          %757 = sbr.rel (%p755) target = $region104
        $region103: #{decoder_block_forward.1} parent=87 // pred_region
          %p758 = scmp.lt.s32.totalorder %s41, 1
          %s759 = scalar_select %p758, %s41, 1
          %s760 = smul.addr %s759, 8
          %s761 = scalar_lea.vmem %s3, %s760
        $region104: #{decoder_block_forward.1} parent=87 // pred_fallthru
          _
        // Predicated region
        $region105: #{decoder_block_forward.1} parent=87 // pred_check
          %p762 = pneg %p165
        $region106: #{decoder_block_forward.1} parent=87 // pred_check_branch
          %764 = sbr.rel (%p762) target = $region108
        $region107: #{decoder_block_forward.1} parent=87 // pred_region
          %p765 = scmp.lt.s32.totalorder %s41, 1
          %s766 = scalar_select %p765, %s41, 1
          %s767 = smul.addr %s766, 8
          %s768 = scalar_lea.vmem %s4, %s767
        $region108: #{decoder_block_forward.1} parent=87 // pred_fallthru
          _
      $region88: #{decoder_block_forward.1} parent=5 // pred_fallthru
        _
      %p769 = scmp.le.s32.totalorder 1, %s41
      %p770 = scmp.lt.s32.totalorder %s41, 3
      %p771 = pnand %p769, %p770
      %p772 = pneg %p771
      // Predicated region
      $region109: #{decoder_block_forward.1} parent=5 // pred_check
        _
      $region110: #{decoder_block_forward.1} parent=5 // pred_check_branch
        %774 = sbr.rel (%p771) target = $region112
      $region111: #{decoder_block_forward.1} parent=5 // pred_region
        %s775 = ssub.s32 %s41, 1
        %s776 = sand.u32 %s54, 1
        %s777 = scalar_lea.sflag [#allocation3], %s776
        %s778 = sand.u32 %s54, 1
        %s779 = smul.addr %s778, 8
        %s780 = scalar_lea.vmem [#allocation2], %s779
        // Predicated region
        $region113: #{decoder_block_forward.1} parent=111 // pred_check
          %p781 = pneg %p67
        $region114: #{decoder_block_forward.1} parent=111 // pred_check_branch
          %783 = sbr.rel (%p781) target = $region116
        $region115: #{decoder_block_forward.1} parent=111 // pred_region
          %785 = dma.done %s777, 128
        $region116: #{decoder_block_forward.1} parent=111 // pred_fallthru
          _
        %s786 = sand.u32 %s46, 1
        %s787 = scalar_lea.sflag [#allocation6], %s786
        %s788 = sand.u32 %s80, 1
        %s789 = smul.addr %s788, 8
        %s790 = scalar_lea.vmem [#allocation5], %s789
        // Predicated region
        $region117: #{decoder_block_forward.1} parent=111 // pred_check
          %p791 = pneg %p93
        $region118: #{decoder_block_forward.1} parent=111 // pred_check_branch
          %793 = sbr.rel (%p791) target = $region120
        $region119: #{decoder_block_forward.1} parent=111 // pred_region
          %795 = dma.done %s787, 128
        $region120: #{decoder_block_forward.1} parent=111 // pred_fallthru
          _
        // Predicated region
        $region121: #{decoder_block_forward.1} parent=111 // pred_check
          %p796 = pneg %p318
        $region122: #{decoder_block_forward.1} parent=111 // pred_check_branch
          %798 = sbr.rel (%p796) target = $region124
        $region123: #{decoder_block_forward.1} parent=111 // pred_region
          %800 = dma.done [#allocation6], 512
        $region124: #{decoder_block_forward.1} parent=111 // pred_fallthru
          _
        // Predicated region
        $region125: #{decoder_block_forward.1} parent=111 // pred_check
          %p801 = pneg %p339
        $region126: #{decoder_block_forward.1} parent=111 // pred_check_branch
          %803 = sbr.rel (%p801) target = $region128
        $region127: #{decoder_block_forward.1} parent=111 // pred_region
          %805 = dma.done [#allocation9], 512
        $region128: #{decoder_block_forward.1} parent=111 // pred_fallthru
          _
        // Predicated region
        $region129: #{decoder_block_forward.1} parent=111 // pred_check
          %p806 = pneg %p360
        $region130: #{decoder_block_forward.1} parent=111 // pred_check_branch
          %808 = sbr.rel (%p806) target = $region132
        $region131: #{decoder_block_forward.1} parent=111 // pred_region
          %810 = dma.done [#allocation9], 512
        $region132: #{decoder_block_forward.1} parent=111 // pred_fallthru
          _
        // Predicated region
        $region133: #{decoder_block_forward.1} parent=111 // pred_check
          %p811 = pneg %p444
        $region134: #{decoder_block_forward.1} parent=111 // pred_check_branch
          %813 = sbr.rel (%p811) target = $region136
        $region135: #{decoder_block_forward.1} parent=111 // pred_region
          %815 = dma.done [#allocation12], 512
        $region136: #{decoder_block_forward.1} parent=111 // pred_fallthru
          _
        // Predicated region
        $region137: #{decoder_block_forward.1} parent=111 // pred_check
          %p816 = pneg %p528
        $region138: #{decoder_block_forward.1} parent=111 // pred_check_branch
          %818 = sbr.rel (%p816) target = $region140
        $region139: #{decoder_block_forward.1} parent=111 // pred_region
          %820 = dma.done [#allocation12], 16
        $region140: #{decoder_block_forward.1} parent=111 // pred_fallthru
          _
        // Predicated region
        $region141: #{decoder_block_forward.1} parent=111 // pred_check
          %p821 = pneg %p549
        $region142: #{decoder_block_forward.1} parent=111 // pred_check_branch
          %823 = sbr.rel (%p821) target = $region144
        $region143: #{decoder_block_forward.1} parent=111 // pred_region
          %825 = dma.done [#allocation15], 16
        $region144: #{decoder_block_forward.1} parent=111 // pred_fallthru
          _
        %s826 = sand.u32 %s54, 1
        %s827 = scalar_lea.sflag [#allocation3], %s826
        %s828 = sand.u32 %s54, 1
        %s829 = smul.addr %s828, 8
        %s830 = scalar_lea.vmem [#allocation2], %s829
        %p831 = pneg %p67
        %p832 = pneg %p64
        %s833 = sand.u32 %s46, 1
        %s834 = scalar_lea.sflag [#allocation6], %s833
        %s835 = sand.u32 %s80, 1
        %s836 = smul.addr %s835, 8
        %s837 = scalar_lea.vmem [#allocation5], %s836
        %p838 = pneg %p93
        %p839 = pneg %p90
        %p840 = scmp.lt.s32.totalorder %s46, 1
        %s841 = scalar_select %p840, %s46, 1
        %s842 = smul.addr %s841, 8
        %s843 = scalar_lea.vmem %s2, %s842
        %p844 = pneg %p119
        %p845 = pneg %p116
        %p846 = scmp.lt.s32.totalorder %s46, 1
        %s847 = scalar_select %p846, %s46, 1
        %s848 = smul.addr %s847, 8
        %s849 = scalar_lea.vmem %s3, %s848
        %p850 = pneg %p145
        %p851 = pneg %p142
        %p852 = scmp.lt.s32.totalorder %s46, 1
        %s853 = scalar_select %p852, %s46, 1
        %s854 = smul.addr %s853, 8
        %s855 = scalar_lea.vmem %s4, %s854
        %p856 = pneg %p171
        %p857 = pneg %p168
        %p858 = pneg %p192
        %p859 = pneg %p189
        %p860 = pneg %p213
        %p861 = pneg %p210
        %p862 = pneg %p234
        %p863 = pneg %p231
        %p864 = pneg %p255
        %p865 = pneg %p252
        %p866 = pneg %p276
        %p867 = pneg %p273
        %p868 = pneg %p297
        %p869 = pneg %p294
        %p870 = pneg %p318
        %p871 = pneg %p315
        %p872 = pneg %p339
        %p873 = pneg %p336
        %p874 = pneg %p360
        %p875 = pneg %p357
        %p876 = pneg %p381
        %p877 = pneg %p378
        %p878 = pneg %p402
        %p879 = pneg %p399
        %p880 = pneg %p423
        %p881 = pneg %p420
        %p882 = pneg %p444
        %p883 = pneg %p441
        %p884 = pneg %p465
        %p885 = pneg %p462
        %p886 = pneg %p486
        %p887 = pneg %p483
        %p888 = pneg %p507
        %p889 = pneg %p504
        %p890 = pneg %p528
        %p891 = pneg %p525
        %p892 = pneg %p549
        %p893 = pneg %p546
        %p894 = pneg %p575
        %p895 = pneg %p572
        %s896 = sand.u32 %s562, 1
        %s897 = scalar_lea.sflag [#allocation4], %s896
        %s898 = sand.u32 %s562, 1
        %s899 = smul.addr %s898, 8
        %s900 = scalar_lea.vmem [#allocation16], %s899
        %p901 = scmp.lt.s32.totalorder %s46, 1
        %s902 = scalar_select %p901, %s46, 1
        %s903 = smul.addr %s902, 8
        %s904 = scalar_lea.vmem %s2, %s903
        %p905 = scmp.lt.s32.totalorder %s46, 1
        %s906 = scalar_select %p905, %s46, 1
        %s907 = smul.addr %s906, 8
        %s908 = scalar_lea.vmem %s3, %s907
        %p909 = scmp.lt.s32.totalorder %s46, 1
        %s910 = scalar_select %p909, %s46, 1
        %s911 = smul.addr %s910, 8
        %s912 = scalar_lea.vmem %s4, %s911
        %v913 = vld [vmem:[%s780] sm:$0xff]
        %v914 = vld [vmem:[%s790] sm:$0xff]
        %v915 = vld [vmem:[%s904] sm:$0xff]
        %v916 = vld [vmem:[%s908] sm:$0xff]
        %v917 = vld [vmem:[%s912] sm:$0xff]
        %v918 = vld [vmem:[%s5] sm:$0xff]
        %v919 = vld [vmem:[%s5 + $0x8] sm:$0xff]
        %v920 = vld [vmem:[%s5 + $0x10] sm:$0xff]
        %v921 = vld [vmem:[%s5 + $0x18] sm:$0xff]
        %vm922 = vcmask 261120
        %v924 = vsel %vm922, %v913, 0
        %926 = vmatpush.msra.mxu0 0.0
        %927 = vmatpush.msra.mxu0 0.0
        %928 = vmatpush.msra.mxu0 0.0
        %929 = vmatpush.msra.mxu0 0.0
        %930 = vmatpush.msra.mxu0 0.0
        %931 = vmatpush.msra.mxu0 0.0
        %932 = vmatpush.msra.mxu0 0.0
        %933 = vmatpush.msra.mxu0 0.0
        %934 = vmatpush.msra.mxu0 0.0
        %935 = vmatpush.msra.mxu0 0.0
        %936 = vmatpush.msra.mxu0 0.0
        %937 = vmatpush.msra.mxu0 0.0
        %938 = vmatpush.msra.mxu0 %v921
        %939 = vmatpush.msra.mxu0 %v920
        %940 = vmatpush.msra.mxu0 %v919
        %941 = vmatpush.msra.mxu0 %v918
        %942 = vmatmul.f32.gmra.mxu0 %v924
        %v943 = vpop.f32.mrf.mxu0
        %v944 = vadd.f32 0.0, %v943
        %945 = vdwg.mxu0
        %v946 = vld [vmem:[%s6] sm:$0xff]
        %v947 = vld [vmem:[%s6 + $0x8] sm:$0xff]
        %v948 = vld [vmem:[%s6 + $0x10] sm:$0xff]
        %v949 = vld [vmem:[%s6 + $0x18] sm:$0xff]
        %v950 = vld [vmem:[%s7] sm:$0x1]
        %952 = vrot.lane.b32.xlu0 %v944, 96
        %v953 = vpop.permute.xlu0 %952
        %vm954 = vcmask 64512
        %v955 = vsel %vm954, %v944, 0
        %v957 = vsel %vm954, %v953, 0
        %959 = vmatpush.xpose.msra.mxu0 0.0
        %960 = vmatpush.xpose.msra.mxu0 0.0
        %961 = vmatpush.xpose.msra.mxu0 0.0
        %962 = vmatpush.xpose.msra.mxu0 0.0
        %963 = vmatpush.xpose.msra.mxu0 0.0
        %964 = vmatpush.xpose.msra.mxu0 0.0
        %965 = vmatpush.xpose.msra.mxu0 0.0
        %966 = vmatpush.xpose.msra.mxu0 0.0
        %967 = vmatpush.xpose.msra.mxu0 0.0
        %968 = vmatpush.xpose.msra.mxu0 0.0
        %969 = vmatpush.xpose.msra.mxu0 0.0
        %970 = vmatpush.xpose.msra.mxu0 0.0
        %971 = vmatpush.xpose.msra.mxu0 0.0
        %972 = vmatpush.xpose.msra.mxu0 0.0
        %973 = vmatpush.xpose.msra.mxu0 0.0
        %974 = vmatpush.xpose.msra.mxu0 %v957
        %975 = vmatmul.f32.gmra.mxu0 %v955
        %v976 = vpop.f32.mrf.mxu0
        %v977 = vadd.f32 0.0, %v976
        %978 = vdwg.mxu0
        %vm979 = vcmp.eq.s32.totalorder %v917, 0
        %v980 = vsel %vm979, -1e+20, %v977
        %v981 = vmul.f32 %v980, 0.17677669
        %v982 = vsel %vm954, %v981, -inf
        %983 = vmax.xlane.f32.xlu0 %v982
        %v984 = vpop.xlane.xlu0 %983
        %v985 = vsub.f32 %v981, %v984
        %v986 = vmul.f32 %v985, 1.442695
        %v987 = vpow.pop %v986
        %v988 = vsel %vm954, %v987, 0.0
        %989 = vadd.xlane.f32.xlu0 %v988
        %v990 = vpop.xlane.xlu0 %989
        %v991 = vrcp.pop %v990
        %v992 = vmul.f32 %v987, %v991
        %993 = vrot.lane.b32.xlu0 %v944, 64
        %v994 = vpop.permute.xlu0 %993
        %v997 = vsel %vm954, %v992, 0
        %999 = vmatpush.msra.mxu0 0.0
        %1000 = vmatpush.msra.mxu0 0.0
        %1001 = vmatpush.msra.mxu0 0.0
        %1002 = vmatpush.msra.mxu0 0.0
        %1003 = vmatpush.msra.mxu0 0.0
        %1004 = vmatpush.msra.mxu0 0.0
        %1005 = vmatpush.msra.mxu0 0.0
        %1006 = vmatpush.msra.mxu0 0.0
        %1007 = vmatpush.msra.mxu0 0.0
        %1008 = vmatpush.msra.mxu0 0.0
        %1009 = vmatpush.msra.mxu0 0.0
        %1010 = vmatpush.msra.mxu0 0.0
        %1011 = vmatpush.msra.mxu0 0.0
        %1012 = vmatpush.msra.mxu0 0.0
        %1013 = vmatpush.msra.mxu0 0.0
        %1014 = vmatpush.msra.mxu0 %v994
        %1015 = vmatmul.f32.gmra.mxu0 %v997
        %v1016 = vpop.f32.mrf.mxu0
        %v1017 = vadd.f32 0.0, %v1016
        %1018 = vdwg.mxu0
        %1019 = vrot.lane.b32.xlu0 %v944, 120
        %v1020 = vpop.permute.xlu0 %1019
        %1021 = vrot.lane.b32.xlu0 %v944, 88
        %v1022 = vpop.permute.xlu0 %1021
        %v1023 = vsel %vm954, %v1020, 0
        %v1025 = vsel %vm954, %v1022, 0
        %1027 = vmatpush.xpose.msra.mxu0 0.0
        %1028 = vmatpush.xpose.msra.mxu0 0.0
        %1029 = vmatpush.xpose.msra.mxu0 0.0
        %1030 = vmatpush.xpose.msra.mxu0 0.0
        %1031 = vmatpush.xpose.msra.mxu0 0.0
        %1032 = vmatpush.xpose.msra.mxu0 0.0
        %1033 = vmatpush.xpose.msra.mxu0 0.0
        %1034 = vmatpush.xpose.msra.mxu0 0.0
        %1035 = vmatpush.xpose.msra.mxu0 0.0
        %1036 = vmatpush.xpose.msra.mxu0 0.0
        %1037 = vmatpush.xpose.msra.mxu0 0.0
        %1038 = vmatpush.xpose.msra.mxu0 0.0
        %1039 = vmatpush.xpose.msra.mxu0 0.0
        %1040 = vmatpush.xpose.msra.mxu0 0.0
        %1041 = vmatpush.xpose.msra.mxu0 0.0
        %1042 = vmatpush.xpose.msra.mxu0 %v1025
        %1043 = vmatmul.f32.gmra.mxu0 %v1023
        %v1044 = vpop.f32.mrf.mxu0
        %v1045 = vadd.f32 0.0, %v1044
        %1046 = vdwg.mxu0
        %v1047 = vsel %vm979, -1e+20, %v1045
        %v1048 = vmul.f32 %v1047, 0.17677669
        %v1049 = vsel %vm954, %v1048, -inf
        %1050 = vmax.xlane.f32.xlu0 %v1049
        %v1051 = vpop.xlane.xlu0 %1050
        %v1052 = vsub.f32 %v1048, %v1051
        %v1053 = vmul.f32 %v1052, 1.442695
        %v1054 = vpow.pop %v1053
        %v1055 = vsel %vm954, %v1054, 0.0
        %1056 = vadd.xlane.f32.xlu0 %v1055
        %v1057 = vpop.xlane.xlu0 %1056
        %v1058 = vrcp.pop %v1057
        %v1059 = vmul.f32 %v1054, %v1058
        %1060 = vrot.lane.b32.xlu0 %v944, 56
        %v1061 = vpop.permute.xlu0 %1060
        %v1064 = vsel %vm954, %v1059, 0
        %1066 = vmatpush.msra.mxu0 0.0
        %1067 = vmatpush.msra.mxu0 0.0
        %1068 = vmatpush.msra.mxu0 0.0
        %1069 = vmatpush.msra.mxu0 0.0
        %1070 = vmatpush.msra.mxu0 0.0
        %1071 = vmatpush.msra.mxu0 0.0
        %1072 = vmatpush.msra.mxu0 0.0
        %1073 = vmatpush.msra.mxu0 0.0
        %1074 = vmatpush.msra.mxu0 0.0
        %1075 = vmatpush.msra.mxu0 0.0
        %1076 = vmatpush.msra.mxu0 0.0
        %1077 = vmatpush.msra.mxu0 0.0
        %1078 = vmatpush.msra.mxu0 0.0
        %1079 = vmatpush.msra.mxu0 0.0
        %1080 = vmatpush.msra.mxu0 0.0
        %1081 = vmatpush.msra.mxu0 %v1061
        %1082 = vmatmul.f32.gmra.mxu0 %v1064
        %v1083 = vpop.f32.mrf.mxu0
        %v1084 = vadd.f32 0.0, %v1083
        %1085 = vdwg.mxu0
        %1086 = vrot.lane.b32.xlu0 %v944, 112
        %v1087 = vpop.permute.xlu0 %1086
        %1088 = vrot.lane.b32.xlu0 %v944, 80
        %v1089 = vpop.permute.xlu0 %1088
        %v1090 = vsel %vm954, %v1087, 0
        %v1092 = vsel %vm954, %v1089, 0
        %1094 = vmatpush.xpose.msra.mxu0 0.0
        %1095 = vmatpush.xpose.msra.mxu0 0.0
        %1096 = vmatpush.xpose.msra.mxu0 0.0
        %1097 = vmatpush.xpose.msra.mxu0 0.0
        %1098 = vmatpush.xpose.msra.mxu0 0.0
        %1099 = vmatpush.xpose.msra.mxu0 0.0
        %1100 = vmatpush.xpose.msra.mxu0 0.0
        %1101 = vmatpush.xpose.msra.mxu0 0.0
        %1102 = vmatpush.xpose.msra.mxu0 0.0
        %1103 = vmatpush.xpose.msra.mxu0 0.0
        %1104 = vmatpush.xpose.msra.mxu0 0.0
        %1105 = vmatpush.xpose.msra.mxu0 0.0
        %1106 = vmatpush.xpose.msra.mxu0 0.0
        %1107 = vmatpush.xpose.msra.mxu0 0.0
        %1108 = vmatpush.xpose.msra.mxu0 0.0
        %1109 = vmatpush.xpose.msra.mxu0 %v1092
        %1110 = vmatmul.f32.gmra.mxu0 %v1090
        %v1111 = vpop.f32.mrf.mxu0
        %v1112 = vadd.f32 0.0, %v1111
        %1113 = vdwg.mxu0
        %v1114 = vsel %vm979, -1e+20, %v1112
        %v1115 = vmul.f32 %v1114, 0.17677669
        %v1116 = vsel %vm954, %v1115, -inf
        %1117 = vmax.xlane.f32.xlu0 %v1116
        %v1118 = vpop.xlane.xlu0 %1117
        %v1119 = vsub.f32 %v1115, %v1118
        %v1120 = vmul.f32 %v1119, 1.442695
        %v1121 = vpow.pop %v1120
        %v1122 = vsel %vm954, %v1121, 0.0
        %1123 = vadd.xlane.f32.xlu0 %v1122
        %v1124 = vpop.xlane.xlu0 %1123
        %v1125 = vrcp.pop %v1124
        %v1126 = vmul.f32 %v1121, %v1125
        %1127 = vrot.lane.b32.xlu0 %v944, 48
        %v1128 = vpop.permute.xlu0 %1127
        %v1131 = vsel %vm954, %v1126, 0
        %1133 = vmatpush.msra.mxu0 0.0
        %1134 = vmatpush.msra.mxu0 0.0
        %1135 = vmatpush.msra.mxu0 0.0
        %1136 = vmatpush.msra.mxu0 0.0
        %1137 = vmatpush.msra.mxu0 0.0
        %1138 = vmatpush.msra.mxu0 0.0
        %1139 = vmatpush.msra.mxu0 0.0
        %1140 = vmatpush.msra.mxu0 0.0
        %1141 = vmatpush.msra.mxu0 0.0
        %1142 = vmatpush.msra.mxu0 0.0
        %1143 = vmatpush.msra.mxu0 0.0
        %1144 = vmatpush.msra.mxu0 0.0
        %1145 = vmatpush.msra.mxu0 0.0
        %1146 = vmatpush.msra.mxu0 0.0
        %1147 = vmatpush.msra.mxu0 0.0
        %1148 = vmatpush.msra.mxu0 %v1128
        %1149 = vmatmul.f32.gmra.mxu0 %v1131
        %v1150 = vpop.f32.mrf.mxu0
        %v1151 = vadd.f32 0.0, %v1150
        %1152 = vdwg.mxu0
        %1153 = vrot.lane.b32.xlu0 %v944, 104
        %v1154 = vpop.permute.xlu0 %1153
        %1155 = vrot.lane.b32.xlu0 %v944, 72
        %v1156 = vpop.permute.xlu0 %1155
        %v1157 = vsel %vm954, %v1154, 0
        %v1159 = vsel %vm954, %v1156, 0
        %1161 = vmatpush.xpose.msra.mxu0 0.0
        %1162 = vmatpush.xpose.msra.mxu0 0.0
        %1163 = vmatpush.xpose.msra.mxu0 0.0
        %1164 = vmatpush.xpose.msra.mxu0 0.0
        %1165 = vmatpush.xpose.msra.mxu0 0.0
        %1166 = vmatpush.xpose.msra.mxu0 0.0
        %1167 = vmatpush.xpose.msra.mxu0 0.0
        %1168 = vmatpush.xpose.msra.mxu0 0.0
        %1169 = vmatpush.xpose.msra.mxu0 0.0
        %1170 = vmatpush.xpose.msra.mxu0 0.0
        %1171 = vmatpush.xpose.msra.mxu0 0.0
        %1172 = vmatpush.xpose.msra.mxu0 0.0
        %1173 = vmatpush.xpose.msra.mxu0 0.0
        %1174 = vmatpush.xpose.msra.mxu0 0.0
        %1175 = vmatpush.xpose.msra.mxu0 0.0
        %1176 = vmatpush.xpose.msra.mxu0 %v1159
        %1177 = vmatmul.f32.gmra.mxu0 %v1157
        %v1178 = vpop.f32.mrf.mxu0
        %v1179 = vadd.f32 0.0, %v1178
        %1180 = vdwg.mxu0
        %v1181 = vsel %vm979, -1e+20, %v1179
        %v1182 = vmul.f32 %v1181, 0.17677669
        %v1183 = vsel %vm954, %v1182, -inf
        %1184 = vmax.xlane.f32.xlu0 %v1183
        %v1185 = vpop.xlane.xlu0 %1184
        %v1186 = vsub.f32 %v1182, %v1185
        %v1187 = vmul.f32 %v1186, 1.442695
        %v1188 = vpow.pop %v1187
        %v1189 = vsel %vm954, %v1188, 0.0
        %1190 = vadd.xlane.f32.xlu0 %v1189
        %v1191 = vpop.xlane.xlu0 %1190
        %v1192 = vrcp.pop %v1191
        %v1193 = vmul.f32 %v1188, %v1192
        %1194 = vrot.lane.b32.xlu0 %v944, 40
        %v1195 = vpop.permute.xlu0 %1194
        %v1198 = vsel %vm954, %v1193, 0
        %1200 = vmatpush.msra.mxu0 0.0
        %1201 = vmatpush.msra.mxu0 0.0
        %1202 = vmatpush.msra.mxu0 0.0
        %1203 = vmatpush.msra.mxu0 0.0
        %1204 = vmatpush.msra.mxu0 0.0
        %1205 = vmatpush.msra.mxu0 0.0
        %1206 = vmatpush.msra.mxu0 0.0
        %1207 = vmatpush.msra.mxu0 0.0
        %1208 = vmatpush.msra.mxu0 0.0
        %1209 = vmatpush.msra.mxu0 0.0
        %1210 = vmatpush.msra.mxu0 0.0
        %1211 = vmatpush.msra.mxu0 0.0
        %1212 = vmatpush.msra.mxu0 0.0
        %1213 = vmatpush.msra.mxu0 0.0
        %1214 = vmatpush.msra.mxu0 0.0
        %1215 = vmatpush.msra.mxu0 %v1195
        %1216 = vmatmul.f32.gmra.mxu0 %v1198
        %v1217 = vpop.f32.mrf.mxu0
        %v1218 = vadd.f32 0.0, %v1217
        %1219 = vdwg.mxu0
        %1221 = vrot.lane.b32.xlu0 %v1084, 8
        %v1222 = vpop.permute.xlu0 %1221
        %1225 = vrot.lane.b32.xlu0 %v1151, 16
        %v1226 = vpop.permute.xlu0 %1225
        %1229 = vrot.lane.b32.xlu0 %v1218, 24
        %v1230 = vpop.permute.xlu0 %1229
        %v1232 = vsel %vm954, %v1017, %v1222
        %vm1233 = vcmask 130048
        %v1234 = vsel %vm1233, %v1232, %v1226
        %vm1235 = vcmask 195584
        %v1236 = vsel %vm1235, %v1234, %v1230
        %v1238 = vperm.slane %v950, 0
        %v1241 = vsel %vm922, %v1236, 0
        %1243 = vmatpush.msra.mxu0 0.0
        %1244 = vmatpush.msra.mxu0 0.0
        %1245 = vmatpush.msra.mxu0 0.0
        %1246 = vmatpush.msra.mxu0 0.0
        %1247 = vmatpush.msra.mxu0 0.0
        %1248 = vmatpush.msra.mxu0 0.0
        %1249 = vmatpush.msra.mxu0 0.0
        %1250 = vmatpush.msra.mxu0 0.0
        %1251 = vmatpush.msra.mxu0 0.0
        %1252 = vmatpush.msra.mxu0 0.0
        %1253 = vmatpush.msra.mxu0 0.0
        %1254 = vmatpush.msra.mxu0 0.0
        %1255 = vmatpush.msra.mxu0 %v949
        %1256 = vmatpush.msra.mxu0 %v948
        %1257 = vmatpush.msra.mxu0 %v947
        %1258 = vmatpush.msra.mxu0 %v946
        %1259 = vmatmul.f32.gmra.mxu0 %v1241
        %v1260 = vpop.f32.mrf.mxu0
        %v1261 = vadd.f32 %v1238, %v1260
        %1262 = vdwg.mxu0
        %v1263 = vadd.f32 %v1261, %v913
        %v1264 = vld [vmem:[%s8] sm:$0x1]
        %v1265 = vld [vmem:[%s9] sm:$0x1]
        %v1266 = vsel %vm922, %v1263, 0.0
        %1267 = vadd.xlane.f32.xlu0 %v1266
        %v1268 = vpop.xlane.xlu0 %1267
        %v1269 = vrcp.pop 32.0
        %v1270 = vmul.f32 32.0, %v1269
        %v1271 = vsub.f32 1.0, %v1270
        %v1272 = vmul.f32 %v1269, %v1271
        %v1273 = vadd.f32 %v1269, %v1272
        %vm1274 = vweird.f32 %v1269
        %v1275 = vsel %vm1274, %v1269, %v1273
        %v1276 = vmul.f32 %v1268, %v1275
        %v1277 = vsub.f32 %v1263, %v1276
        %v1278 = vmul.f32 %v1277, %v1277
        %v1279 = vsel %vm922, %v1278, 0.0
        %1280 = vadd.xlane.f32.xlu0 %v1279
        %v1281 = vpop.xlane.xlu0 %1280
        %v1282 = vmul.f32 %v1281, %v1275
        %v1283 = vadd.f32 %v1282, 1e-05
        %v1284 = vrsqrt.pop %v1283
        %v1285 = vmul.f32 %v1284, %v1283
        %v1286 = vmul.f32 %v1285, %v1284
        %v1287 = vmul.f32 0.5, %v1286
        %v1288 = vsub.f32 1.5, %v1287
        %v1289 = vmul.f32 %v1284, %v1288
        %vm1290 = vweird.f32 %v1283
        %vm1291 = vweird.f32 %v1284
        %vm1292 = vmor %vm1290, %vm1291
        %v1293 = vsel %vm1292, %v1284, %v1289
        %v1294 = vmul.f32 %v1277, %v1293
        %v1296 = vperm.slane %v1264, 0
        %v1298 = vmul.f32 %v1294, %v1296
        %v1300 = vperm.slane %v1265, 0
        %v1302 = vadd.f32 %v1298, %v1300
        %v1303 = vld [vmem:[%s10] sm:$0xff]
        %v1304 = vld [vmem:[%s10 + $0x8] sm:$0xff]
        %v1305 = vld [vmem:[%s10 + $0x10] sm:$0xff]
        %v1306 = vld [vmem:[%s10 + $0x18] sm:$0xff]
        %v1308 = vsel %vm922, %v1302, 0
        %1310 = vmatpush.msra.mxu0 0.0
        %1311 = vmatpush.msra.mxu0 0.0
        %1312 = vmatpush.msra.mxu0 0.0
        %1313 = vmatpush.msra.mxu0 0.0
        %1314 = vmatpush.msra.mxu0 0.0
        %1315 = vmatpush.msra.mxu0 0.0
        %1316 = vmatpush.msra.mxu0 0.0
        %1317 = vmatpush.msra.mxu0 0.0
        %1318 = vmatpush.msra.mxu0 0.0
        %1319 = vmatpush.msra.mxu0 0.0
        %1320 = vmatpush.msra.mxu0 0.0
        %1321 = vmatpush.msra.mxu0 0.0
        %1322 = vmatpush.msra.mxu0 %v1306
        %1323 = vmatpush.msra.mxu0 %v1305
        %1324 = vmatpush.msra.mxu0 %v1304
        %1325 = vmatpush.msra.mxu0 %v1303
        %1326 = vmatmul.f32.gmra.mxu0 %v1308
        %v1327 = vpop.f32.mrf.mxu0
        %v1328 = vadd.f32 0.0, %v1327
        %1329 = vdwg.mxu0
        %v1330 = vld [vmem:[#allocation7] sm:$0xff]
        %v1331 = vld [vmem:[#allocation7 + $0x8] sm:$0xff]
        %v1332 = vld [vmem:[#allocation7 + $0x10] sm:$0xff]
        %v1333 = vld [vmem:[#allocation7 + $0x18] sm:$0xff]
        %v1335 = vsel %vm922, %v915, 0
        %1337 = vmatpush.msra.mxu0 0.0
        %1338 = vmatpush.msra.mxu0 0.0
        %1339 = vmatpush.msra.mxu0 0.0
        %1340 = vmatpush.msra.mxu0 0.0
        %1341 = vmatpush.msra.mxu0 0.0
        %1342 = vmatpush.msra.mxu0 0.0
        %1343 = vmatpush.msra.mxu0 0.0
        %1344 = vmatpush.msra.mxu0 0.0
        %1345 = vmatpush.msra.mxu0 0.0
        %1346 = vmatpush.msra.mxu0 0.0
        %1347 = vmatpush.msra.mxu0 0.0
        %1348 = vmatpush.msra.mxu0 0.0
        %1349 = vmatpush.msra.mxu0 %v1333
        %1350 = vmatpush.msra.mxu0 %v1332
        %1351 = vmatpush.msra.mxu0 %v1331
        %1352 = vmatpush.msra.mxu0 %v1330
        %1353 = vmatmul.f32.gmra.mxu0 %v1335
        %v1354 = vpop.f32.mrf.mxu0
        %v1355 = vadd.f32 0.0, %v1354
        %1356 = vdwg.mxu0
        %v1357 = vld [vmem:[#allocation8] sm:$0xff]
        %v1358 = vld [vmem:[#allocation8 + $0x8] sm:$0xff]
        %v1359 = vld [vmem:[#allocation8 + $0x10] sm:$0xff]
        %v1360 = vld [vmem:[#allocation8 + $0x18] sm:$0xff]
        %v1362 = vsel %vm922, %v914, 0
        %1364 = vmatpush.msra.mxu0 0.0
        %1365 = vmatpush.msra.mxu0 0.0
        %1366 = vmatpush.msra.mxu0 0.0
        %1367 = vmatpush.msra.mxu0 0.0
        %1368 = vmatpush.msra.mxu0 0.0
        %1369 = vmatpush.msra.mxu0 0.0
        %1370 = vmatpush.msra.mxu0 0.0
        %1371 = vmatpush.msra.mxu0 0.0
        %1372 = vmatpush.msra.mxu0 0.0
        %1373 = vmatpush.msra.mxu0 0.0
        %1374 = vmatpush.msra.mxu0 0.0
        %1375 = vmatpush.msra.mxu0 0.0
        %1376 = vmatpush.msra.mxu0 %v1360
        %1377 = vmatpush.msra.mxu0 %v1359
        %1378 = vmatpush.msra.mxu0 %v1358
        %1379 = vmatpush.msra.mxu0 %v1357
        %1380 = vmatmul.f32.gmra.mxu0 %v1362
        %v1381 = vpop.f32.mrf.mxu0
        %v1382 = vadd.f32 0.0, %v1381
        %1383 = vdwg.mxu0
        %v1384 = vld [vmem:[#allocation10] sm:$0xff]
        %v1385 = vld [vmem:[#allocation10 + $0x8] sm:$0xff]
        %v1386 = vld [vmem:[#allocation10 + $0x10] sm:$0xff]
        %v1387 = vld [vmem:[#allocation10 + $0x18] sm:$0xff]
        %v1388 = vld [vmem:[%s14] sm:$0x1]
        %v1390 = vsel %vm954, %v1328, 0
        %v1393 = vsel %vm954, %v1355, 0
        %1395 = vmatpush.xpose.msra.mxu0 0.0
        %1396 = vmatpush.xpose.msra.mxu0 0.0
        %1397 = vmatpush.xpose.msra.mxu0 0.0
        %1398 = vmatpush.xpose.msra.mxu0 0.0
        %1399 = vmatpush.xpose.msra.mxu0 0.0
        %1400 = vmatpush.xpose.msra.mxu0 0.0
        %1401 = vmatpush.xpose.msra.mxu0 0.0
        %1402 = vmatpush.xpose.msra.mxu0 0.0
        %1403 = vmatpush.xpose.msra.mxu0 0.0
        %1404 = vmatpush.xpose.msra.mxu0 0.0
        %1405 = vmatpush.xpose.msra.mxu0 0.0
        %1406 = vmatpush.xpose.msra.mxu0 0.0
        %1407 = vmatpush.xpose.msra.mxu0 0.0
        %1408 = vmatpush.xpose.msra.mxu0 0.0
        %1409 = vmatpush.xpose.msra.mxu0 0.0
        %1410 = vmatpush.xpose.msra.mxu0 %v1393
        %1411 = vmatmul.f32.gmra.mxu0 %v1390
        %v1412 = vpop.f32.mrf.mxu0
        %v1413 = vadd.f32 0.0, %v1412
        %1414 = vdwg.mxu0
        %vm1415 = vcmp.eq.s32.totalorder %v916, 0
        %v1416 = vsel %vm1415, -1e+20, %v1413
        %v1417 = vmul.f32 %v1416, 0.17677669
        %v1418 = vsel %vm954, %v1417, -inf
        %1419 = vmax.xlane.f32.xlu0 %v1418
        %v1420 = vpop.xlane.xlu0 %1419
        %v1421 = vsub.f32 %v1417, %v1420
        %v1422 = vmul.f32 %v1421, 1.442695
        %v1423 = vpow.pop %v1422
        %v1424 = vsel %vm954, %v1423, 0.0
        %1425 = vadd.xlane.f32.xlu0 %v1424
        %v1426 = vpop.xlane.xlu0 %1425
        %v1427 = vrcp.pop %v1426
        %v1428 = vmul.f32 %v1423, %v1427
        %v1430 = vsel %vm954, %v1428, 0
        %1432 = vmatpush.msra.mxu0 0.0
        %1433 = vmatpush.msra.mxu0 0.0
        %1434 = vmatpush.msra.mxu0 0.0
        %1435 = vmatpush.msra.mxu0 0.0
        %1436 = vmatpush.msra.mxu0 0.0
        %1437 = vmatpush.msra.mxu0 0.0
        %1438 = vmatpush.msra.mxu0 0.0
        %1439 = vmatpush.msra.mxu0 0.0
        %1440 = vmatpush.msra.mxu0 0.0
        %1441 = vmatpush.msra.mxu0 0.0
        %1442 = vmatpush.msra.mxu0 0.0
        %1443 = vmatpush.msra.mxu0 0.0
        %1444 = vmatpush.msra.mxu0 0.0
        %1445 = vmatpush.msra.mxu0 0.0
        %1446 = vmatpush.msra.mxu0 0.0
        %1447 = vmatpush.msra.mxu0 %v1382
        %1448 = vmatmul.f32.gmra.mxu0 %v1430
        %v1449 = vpop.f32.mrf.mxu0
        %v1450 = vadd.f32 0.0, %v1449
        %1451 = vdwg.mxu0
        %1452 = vrot.lane.b32.xlu0 %v1328, 120
        %v1453 = vpop.permute.xlu0 %1452
        %1454 = vrot.lane.b32.xlu0 %v1355, 120
        %v1455 = vpop.permute.xlu0 %1454
        %v1456 = vsel %vm954, %v1453, 0
        %v1458 = vsel %vm954, %v1455, 0
        %1460 = vmatpush.xpose.msra.mxu0 0.0
        %1461 = vmatpush.xpose.msra.mxu0 0.0
        %1462 = vmatpush.xpose.msra.mxu0 0.0
        %1463 = vmatpush.xpose.msra.mxu0 0.0
        %1464 = vmatpush.xpose.msra.mxu0 0.0
        %1465 = vmatpush.xpose.msra.mxu0 0.0
        %1466 = vmatpush.xpose.msra.mxu0 0.0
        %1467 = vmatpush.xpose.msra.mxu0 0.0
        %1468 = vmatpush.xpose.msra.mxu0 0.0
        %1469 = vmatpush.xpose.msra.mxu0 0.0
        %1470 = vmatpush.xpose.msra.mxu0 0.0
        %1471 = vmatpush.xpose.msra.mxu0 0.0
        %1472 = vmatpush.xpose.msra.mxu0 0.0
        %1473 = vmatpush.xpose.msra.mxu0 0.0
        %1474 = vmatpush.xpose.msra.mxu0 0.0
        %1475 = vmatpush.xpose.msra.mxu0 %v1458
        %1476 = vmatmul.f32.gmra.mxu0 %v1456
        %v1477 = vpop.f32.mrf.mxu0
        %v1478 = vadd.f32 0.0, %v1477
        %1479 = vdwg.mxu0
        %v1480 = vsel %vm1415, -1e+20, %v1478
        %v1481 = vmul.f32 %v1480, 0.17677669
        %v1482 = vsel %vm954, %v1481, -inf
        %1483 = vmax.xlane.f32.xlu0 %v1482
        %v1484 = vpop.xlane.xlu0 %1483
        %v1485 = vsub.f32 %v1481, %v1484
        %v1486 = vmul.f32 %v1485, 1.442695
        %v1487 = vpow.pop %v1486
        %v1488 = vsel %vm954, %v1487, 0.0
        %1489 = vadd.xlane.f32.xlu0 %v1488
        %v1490 = vpop.xlane.xlu0 %1489
        %v1491 = vrcp.pop %v1490
        %v1492 = vmul.f32 %v1487, %v1491
        %1494 = vrot.lane.b32.xlu0 %v1382, 120
        %v1495 = vpop.permute.xlu0 %1494
        %v1498 = vsel %vm954, %v1492, 0
        %1500 = vmatpush.msra.mxu0 0.0
        %1501 = vmatpush.msra.mxu0 0.0
        %1502 = vmatpush.msra.mxu0 0.0
        %1503 = vmatpush.msra.mxu0 0.0
        %1504 = vmatpush.msra.mxu0 0.0
        %1505 = vmatpush.msra.mxu0 0.0
        %1506 = vmatpush.msra.mxu0 0.0
        %1507 = vmatpush.msra.mxu0 0.0
        %1508 = vmatpush.msra.mxu0 0.0
        %1509 = vmatpush.msra.mxu0 0.0
        %1510 = vmatpush.msra.mxu0 0.0
        %1511 = vmatpush.msra.mxu0 0.0
        %1512 = vmatpush.msra.mxu0 0.0
        %1513 = vmatpush.msra.mxu0 0.0
        %1514 = vmatpush.msra.mxu0 0.0
        %1515 = vmatpush.msra.mxu0 %v1495
        %1516 = vmatmul.f32.gmra.mxu0 %v1498
        %v1517 = vpop.f32.mrf.mxu0
        %v1518 = vadd.f32 0.0, %v1517
        %1519 = vdwg.mxu0
        %1520 = vrot.lane.b32.xlu0 %v1328, 112
        %v1521 = vpop.permute.xlu0 %1520
        %1522 = vrot.lane.b32.xlu0 %v1355, 112
        %v1523 = vpop.permute.xlu0 %1522
        %v1524 = vsel %vm954, %v1521, 0
        %v1526 = vsel %vm954, %v1523, 0
        %1528 = vmatpush.xpose.msra.mxu0 0.0
        %1529 = vmatpush.xpose.msra.mxu0 0.0
        %1530 = vmatpush.xpose.msra.mxu0 0.0
        %1531 = vmatpush.xpose.msra.mxu0 0.0
        %1532 = vmatpush.xpose.msra.mxu0 0.0
        %1533 = vmatpush.xpose.msra.mxu0 0.0
        %1534 = vmatpush.xpose.msra.mxu0 0.0
        %1535 = vmatpush.xpose.msra.mxu0 0.0
        %1536 = vmatpush.xpose.msra.mxu0 0.0
        %1537 = vmatpush.xpose.msra.mxu0 0.0
        %1538 = vmatpush.xpose.msra.mxu0 0.0
        %1539 = vmatpush.xpose.msra.mxu0 0.0
        %1540 = vmatpush.xpose.msra.mxu0 0.0
        %1541 = vmatpush.xpose.msra.mxu0 0.0
        %1542 = vmatpush.xpose.msra.mxu0 0.0
        %1543 = vmatpush.xpose.msra.mxu0 %v1526
        %1544 = vmatmul.f32.gmra.mxu0 %v1524
        %v1545 = vpop.f32.mrf.mxu0
        %v1546 = vadd.f32 0.0, %v1545
        %1547 = vdwg.mxu0
        %v1548 = vsel %vm1415, -1e+20, %v1546
        %v1549 = vmul.f32 %v1548, 0.17677669
        %v1550 = vsel %vm954, %v1549, -inf
        %1551 = vmax.xlane.f32.xlu0 %v1550
        %v1552 = vpop.xlane.xlu0 %1551
        %v1553 = vsub.f32 %v1549, %v1552
        %v1554 = vmul.f32 %v1553, 1.442695
        %v1555 = vpow.pop %v1554
        %v1556 = vsel %vm954, %v1555, 0.0
        %1557 = vadd.xlane.f32.xlu0 %v1556
        %v1558 = vpop.xlane.xlu0 %1557
        %v1559 = vrcp.pop %v1558
        %v1560 = vmul.f32 %v1555, %v1559
        %1561 = vrot.lane.b32.xlu0 %v1382, 112
        %v1562 = vpop.permute.xlu0 %1561
        %v1565 = vsel %vm954, %v1560, 0
        %1567 = vmatpush.msra.mxu0 0.0
        %1568 = vmatpush.msra.mxu0 0.0
        %1569 = vmatpush.msra.mxu0 0.0
        %1570 = vmatpush.msra.mxu0 0.0
        %1571 = vmatpush.msra.mxu0 0.0
        %1572 = vmatpush.msra.mxu0 0.0
        %1573 = vmatpush.msra.mxu0 0.0
        %1574 = vmatpush.msra.mxu0 0.0
        %1575 = vmatpush.msra.mxu0 0.0
        %1576 = vmatpush.msra.mxu0 0.0
        %1577 = vmatpush.msra.mxu0 0.0
        %1578 = vmatpush.msra.mxu0 0.0
        %1579 = vmatpush.msra.mxu0 0.0
        %1580 = vmatpush.msra.mxu0 0.0
        %1581 = vmatpush.msra.mxu0 0.0
        %1582 = vmatpush.msra.mxu0 %v1562
        %1583 = vmatmul.f32.gmra.mxu0 %v1565
        %v1584 = vpop.f32.mrf.mxu0
        %v1585 = vadd.f32 0.0, %v1584
        %1586 = vdwg.mxu0
        %1587 = vrot.lane.b32.xlu0 %v1328, 104
        %v1588 = vpop.permute.xlu0 %1587
        %1589 = vrot.lane.b32.xlu0 %v1355, 104
        %v1590 = vpop.permute.xlu0 %1589
        %v1591 = vsel %vm954, %v1588, 0
        %v1593 = vsel %vm954, %v1590, 0
        %1595 = vmatpush.xpose.msra.mxu0 0.0
        %1596 = vmatpush.xpose.msra.mxu0 0.0
        %1597 = vmatpush.xpose.msra.mxu0 0.0
        %1598 = vmatpush.xpose.msra.mxu0 0.0
        %1599 = vmatpush.xpose.msra.mxu0 0.0
        %1600 = vmatpush.xpose.msra.mxu0 0.0
        %1601 = vmatpush.xpose.msra.mxu0 0.0
        %1602 = vmatpush.xpose.msra.mxu0 0.0
        %1603 = vmatpush.xpose.msra.mxu0 0.0
        %1604 = vmatpush.xpose.msra.mxu0 0.0
        %1605 = vmatpush.xpose.msra.mxu0 0.0
        %1606 = vmatpush.xpose.msra.mxu0 0.0
        %1607 = vmatpush.xpose.msra.mxu0 0.0
        %1608 = vmatpush.xpose.msra.mxu0 0.0
        %1609 = vmatpush.xpose.msra.mxu0 0.0
        %1610 = vmatpush.xpose.msra.mxu0 %v1593
        %1611 = vmatmul.f32.gmra.mxu0 %v1591
        %v1612 = vpop.f32.mrf.mxu0
        %v1613 = vadd.f32 0.0, %v1612
        %1614 = vdwg.mxu0
        %v1615 = vsel %vm1415, -1e+20, %v1613
        %v1616 = vmul.f32 %v1615, 0.17677669
        %v1617 = vsel %vm954, %v1616, -inf
        %1618 = vmax.xlane.f32.xlu0 %v1617
        %v1619 = vpop.xlane.xlu0 %1618
        %v1620 = vsub.f32 %v1616, %v1619
        %v1621 = vmul.f32 %v1620, 1.442695
        %v1622 = vpow.pop %v1621
        %v1623 = vsel %vm954, %v1622, 0.0
        %1624 = vadd.xlane.f32.xlu0 %v1623
        %v1625 = vpop.xlane.xlu0 %1624
        %v1626 = vrcp.pop %v1625
        %v1627 = vmul.f32 %v1622, %v1626
        %1628 = vrot.lane.b32.xlu0 %v1382, 104
        %v1629 = vpop.permute.xlu0 %1628
        %v1632 = vsel %vm954, %v1627, 0
        %1634 = vmatpush.msra.mxu0 0.0
        %1635 = vmatpush.msra.mxu0 0.0
        %1636 = vmatpush.msra.mxu0 0.0
        %1637 = vmatpush.msra.mxu0 0.0
        %1638 = vmatpush.msra.mxu0 0.0
        %1639 = vmatpush.msra.mxu0 0.0
        %1640 = vmatpush.msra.mxu0 0.0
        %1641 = vmatpush.msra.mxu0 0.0
        %1642 = vmatpush.msra.mxu0 0.0
        %1643 = vmatpush.msra.mxu0 0.0
        %1644 = vmatpush.msra.mxu0 0.0
        %1645 = vmatpush.msra.mxu0 0.0
        %1646 = vmatpush.msra.mxu0 0.0
        %1647 = vmatpush.msra.mxu0 0.0
        %1648 = vmatpush.msra.mxu0 0.0
        %1649 = vmatpush.msra.mxu0 %v1629
        %1650 = vmatmul.f32.gmra.mxu0 %v1632
        %v1651 = vpop.f32.mrf.mxu0
        %v1652 = vadd.f32 0.0, %v1651
        %1653 = vdwg.mxu0
        %1655 = vrot.lane.b32.xlu0 %v1518, 8
        %v1656 = vpop.permute.xlu0 %1655
        %1659 = vrot.lane.b32.xlu0 %v1585, 16
        %v1660 = vpop.permute.xlu0 %1659
        %1663 = vrot.lane.b32.xlu0 %v1652, 24
        %v1664 = vpop.permute.xlu0 %1663
        %v1666 = vsel %vm954, %v1450, %v1656
        %v1667 = vsel %vm1233, %v1666, %v1660
        %v1668 = vsel %vm1235, %v1667, %v1664
        %v1670 = vperm.slane %v1388, 0
        %v1673 = vsel %vm922, %v1668, 0
        %1675 = vmatpush.msra.mxu0 0.0
        %1676 = vmatpush.msra.mxu0 0.0
        %1677 = vmatpush.msra.mxu0 0.0
        %1678 = vmatpush.msra.mxu0 0.0
        %1679 = vmatpush.msra.mxu0 0.0
        %1680 = vmatpush.msra.mxu0 0.0
        %1681 = vmatpush.msra.mxu0 0.0
        %1682 = vmatpush.msra.mxu0 0.0
        %1683 = vmatpush.msra.mxu0 0.0
        %1684 = vmatpush.msra.mxu0 0.0
        %1685 = vmatpush.msra.mxu0 0.0
        %1686 = vmatpush.msra.mxu0 0.0
        %1687 = vmatpush.msra.mxu0 %v1387
        %1688 = vmatpush.msra.mxu0 %v1386
        %1689 = vmatpush.msra.mxu0 %v1385
        %1690 = vmatpush.msra.mxu0 %v1384
        %1691 = vmatmul.f32.gmra.mxu0 %v1673
        %v1692 = vpop.f32.mrf.mxu0
        %v1693 = vadd.f32 %v1670, %v1692
        %1694 = vdwg.mxu0
        %v1695 = vadd.f32 %v1693, %v1302
        %v1696 = vld [vmem:[%s15] sm:$0x1]
        %v1697 = vld [vmem:[%s16] sm:$0x1]
        %v1698 = vsel %vm922, %v1695, 0.0
        %1699 = vadd.xlane.f32.xlu0 %v1698
        %v1700 = vpop.xlane.xlu0 %1699
        %v1701 = vmul.f32 %v1700, %v1275
        %v1702 = vsub.f32 %v1695, %v1701
        %v1703 = vmul.f32 %v1702, %v1702
        %v1704 = vsel %vm922, %v1703, 0.0
        %1705 = vadd.xlane.f32.xlu0 %v1704
        %v1706 = vpop.xlane.xlu0 %1705
        %v1707 = vmul.f32 %v1706, %v1275
        %v1708 = vadd.f32 %v1707, 1e-05
        %v1709 = vrsqrt.pop %v1708
        %v1710 = vmul.f32 %v1709, %v1708
        %v1711 = vmul.f32 %v1710, %v1709
        %v1712 = vmul.f32 0.5, %v1711
        %v1713 = vsub.f32 1.5, %v1712
        %v1714 = vmul.f32 %v1709, %v1713
        %vm1715 = vweird.f32 %v1708
        %vm1716 = vweird.f32 %v1709
        %vm1717 = vmor %vm1715, %vm1716
        %v1718 = vsel %vm1717, %v1709, %v1714
        %v1719 = vmul.f32 %v1702, %v1718
        %v1721 = vperm.slane %v1696, 0
        %v1723 = vmul.f32 %v1719, %v1721
        %v1725 = vperm.slane %v1697, 0
        %v1727 = vadd.f32 %v1723, %v1725
        %v1728 = vld [vmem:[#allocation11] sm:$0xff]
        %v1729 = vld [vmem:[#allocation11 + $0x8] sm:$0xff]
        %v1730 = vld [vmem:[#allocation11 + $0x10] sm:$0xff]
        %v1731 = vld [vmem:[#allocation11 + $0x18] sm:$0xff]
        %v1732 = vld [vmem:[%s18] sm:$0x1]
        %v1734 = vperm.slane %v1732, 0
        %v1737 = vsel %vm922, %v1727, 0
        %1739 = vmatpush.msra.mxu0 0.0
        %1740 = vmatpush.msra.mxu0 0.0
        %1741 = vmatpush.msra.mxu0 0.0
        %1742 = vmatpush.msra.mxu0 0.0
        %1743 = vmatpush.msra.mxu0 0.0
        %1744 = vmatpush.msra.mxu0 0.0
        %1745 = vmatpush.msra.mxu0 0.0
        %1746 = vmatpush.msra.mxu0 0.0
        %1747 = vmatpush.msra.mxu0 0.0
        %1748 = vmatpush.msra.mxu0 0.0
        %1749 = vmatpush.msra.mxu0 0.0
        %1750 = vmatpush.msra.mxu0 0.0
        %1751 = vmatpush.msra.mxu0 %v1731
        %1752 = vmatpush.msra.mxu0 %v1730
        %1753 = vmatpush.msra.mxu0 %v1729
        %1754 = vmatpush.msra.mxu0 %v1728
        %1755 = vmatmul.f32.gmra.mxu0 %v1737
        %v1756 = vpop.f32.mrf.mxu0
        %v1757 = vadd.f32 %v1734, %v1756
        %1758 = vdwg.mxu0
        %v1759 = vmax.f32 %v1757, 0.0
        %v1760 = vld [vmem:[%s19] sm:$0xff]
        %v1761 = vld [vmem:[%s19 + $0x8] sm:$0xff]
        %v1762 = vld [vmem:[%s19 + $0x10] sm:$0xff]
        %v1763 = vld [vmem:[%s19 + $0x18] sm:$0xff]
        %v1764 = vld [vmem:[%s19 + $0x20] sm:$0xff]
        %v1765 = vld [vmem:[%s19 + $0x28] sm:$0xff]
        %v1766 = vld [vmem:[%s19 + $0x30] sm:$0xff]
        %v1767 = vld [vmem:[%s19 + $0x38] sm:$0xff]
        %v1768 = vld [vmem:[%s20] sm:$0x1]
        %v1770 = vperm.slane %v1768, 0
        %vm1772 = vcmask 523264
        %v1774 = vsel %vm1772, %v1759, 0
        %1776 = vmatpush.msra.mxu0 0.0
        %1777 = vmatpush.msra.mxu0 0.0
        %1778 = vmatpush.msra.mxu0 0.0
        %1779 = vmatpush.msra.mxu0 0.0
        %1780 = vmatpush.msra.mxu0 0.0
        %1781 = vmatpush.msra.mxu0 0.0
        %1782 = vmatpush.msra.mxu0 0.0
        %1783 = vmatpush.msra.mxu0 0.0
        %1784 = vmatpush.msra.mxu0 %v1767
        %1785 = vmatpush.msra.mxu0 %v1766
        %1786 = vmatpush.msra.mxu0 %v1765
        %1787 = vmatpush.msra.mxu0 %v1764
        %1788 = vmatpush.msra.mxu0 %v1763
        %1789 = vmatpush.msra.mxu0 %v1762
        %1790 = vmatpush.msra.mxu0 %v1761
        %1791 = vmatpush.msra.mxu0 %v1760
        %1792 = vmatmul.f32.gmra.mxu0 %v1774
        %v1793 = vpop.f32.mrf.mxu0
        %v1794 = vadd.f32 %v1770, %v1793
        %1795 = vdwg.mxu0
        %v1796 = vadd.f32 %v1794, %v1727
        %v1797 = vld [vmem:[#allocation13] sm:$0x1]
        %v1798 = vld [vmem:[#allocation14] sm:$0x1]
        %v1799 = vsel %vm922, %v1796, 0.0
        %1800 = vadd.xlane.f32.xlu0 %v1799
        %v1801 = vpop.xlane.xlu0 %1800
        %v1802 = vmul.f32 %v1801, %v1275
        %v1803 = vsub.f32 %v1796, %v1802
        %v1804 = vmul.f32 %v1803, %v1803
        %v1805 = vsel %vm922, %v1804, 0.0
        %1806 = vadd.xlane.f32.xlu0 %v1805
        %v1807 = vpop.xlane.xlu0 %1806
        %v1808 = vmul.f32 %v1807, %v1275
        %v1809 = vadd.f32 %v1808, 1e-05
        %v1810 = vrsqrt.pop %v1809
        %v1811 = vmul.f32 %v1810, %v1809
        %v1812 = vmul.f32 %v1811, %v1810
        %v1813 = vmul.f32 0.5, %v1812
        %v1814 = vsub.f32 1.5, %v1813
        %v1815 = vmul.f32 %v1810, %v1814
        %vm1816 = vweird.f32 %v1809
        %vm1817 = vweird.f32 %v1810
        %vm1818 = vmor %vm1816, %vm1817
        %v1819 = vsel %vm1818, %v1810, %v1815
        %v1820 = vmul.f32 %v1803, %v1819
        %v1822 = vperm.slane %v1797, 0
        %v1824 = vmul.f32 %v1820, %v1822
        %v1826 = vperm.slane %v1798, 0
        %v1828 = vadd.f32 %v1824, %v1826
        %1829 = vst.msk [vmem:[%s900] sm:$0xff] %vm922, %v1828
        %s1830 = sand.u32 %s562, 1
        %s1831 = scalar_lea.sflag [#allocation4], %s1830
        %s1832 = sand.u32 %s562, 1
        %s1833 = smul.addr %s1832, 8
        %s1834 = scalar_lea.vmem [#allocation16], %s1833
        // Predicated region
        $region145: #{decoder_block_forward.1} parent=111 // pred_check
          %p1835 = pneg %p572
        $region146: #{decoder_block_forward.1} parent=111 // pred_check_branch
          %1837 = sbr.rel (%p1835) target = $region148
        $region147: #{decoder_block_forward.1} parent=111 // pred_region
          %1839 = vsyncadd %s1831, 0
          %s1840 = smul.addr %s46, 8
          %s1841 = scalar_lea.hbm %s23, %s1840
          %s1843 = sshll.u32 %s1834, 4
          %s1844 = int_to_ptr.vmem [resolvable:$true] %s1843
          %s1845 = sshll.u32 %s1841, 4
          %s1846 = int_to_ptr.hbm [resolvable:$true] %s1845
          %1848 = dma.vmem_to_hbm [thread:$0]  %s1844, 128, %s1846, %s1831
        $region148: #{decoder_block_forward.1} parent=111 // pred_fallthru
          _
      $region112: #{decoder_block_forward.1} parent=5 // pred_fallthru
        _
      %p1849 = scmp.le.s32.totalorder 2, %s41
      // Predicated region
      $region149: #{decoder_block_forward.1} parent=5 // pred_check
        %p1850 = pneg %p1849
      $region150: #{decoder_block_forward.1} parent=5 // pred_check_branch
        %1852 = sbr.rel (%p1850) target = $region152
      $region151: #{decoder_block_forward.1} parent=5 // pred_region
        %s1853 = ssub.s32 %s41, 2
        // Predicated region
        $region153: #{decoder_block_forward.1} parent=151 // pred_check
          %p1854 = pneg %p578
        $region154: #{decoder_block_forward.1} parent=151 // pred_check_branch
          %1856 = sbr.rel (%p1854) target = $region156
        $region155: #{decoder_block_forward.1} parent=151 // pred_region
          %s1857 = sand.u32 %s563, 1
          %s1858 = scalar_lea.sflag [#allocation4], %s1857
          %s1859 = sand.u32 %s563, 1
          %s1860 = smul.addr %s1859, 8
          %s1861 = scalar_lea.vmem [#allocation16], %s1860
          %1863 = dma.done %s1858, 128
        $region156: #{decoder_block_forward.1} parent=151 // pred_fallthru
          _
      $region152: #{decoder_block_forward.1} parent=5 // pred_fallthru
        _
    $region6: #{decoder_block_forward.1} parent=1 // loop_footer
      %s45 = sadd.s32 1, %s41
    $region7: #{decoder_block_forward.1} parent=1 // loop_footer_branch
      %40 = sbr.rel target = $region3
    $region8: #{decoder_block_forward.1} parent=1 // loop_exit
      _
    %1864 = vsyncpa [#allocation3], 1
    %s1865 = scalar_lea.sflag [#allocation3], 1
    %1866 = vsyncpa %s1865, 1
    %1867 = vsyncpa [#allocation6], 1
    %s1868 = scalar_lea.sflag [#allocation6], 1
    %1869 = vsyncpa %s1868, 1
    %1870 = vsyncpa [#allocation9], 1
    %1871 = vsyncpa [#allocation12], 1
    %1872 = vsyncpa [#allocation15], 1
    %1873 = vsyncpa [#allocation4], 1
    %s1874 = scalar_lea.sflag [#allocation4], 1
    %1875 = vsyncpa %s1874, 1

</llo_original>
